<compile_context>
chip_gen: v7x
topology: tpu7x:2x2x1
jax: 0.10.0
libtpu: 0.0.40
codegen_flags: <defaults>
</compile_context>

<pallas_src>
from math import sqrt

import jax
import jax.numpy as jnp
from jax.experimental import pallas as pl
from jax.experimental.pallas import tpu as pltpu


def _make_kernel(has_pos, scale, eps, mm_precision):
    def kernel(*refs):
        if has_pos:
            q_ref, k_ref, v_ref, pos_ref, gamma_ref, beta_ref, o_ref = refs
        else:
            q_ref, k_ref, v_ref, gamma_ref, beta_ref, o_ref = refs
            pos_ref = None

        # Native-dtype operands for the MXU (bf16 stays bf16); f32 accumulation.
        q = q_ref[...]                                  # (Bt, N, D)
        k = k_ref[...]
        if pos_ref is not None:
            k = k + pos_ref[...]                        # (1,N,D) or (Bt,N,D) broadcast
        v = v_ref[...]

        # Fold 1/sqrt(D) into q: an N*D-sized multiply instead of N*N on scores.
        qs = q * scale

        # scores = (q*scale) @ k^T ; contraction on the trailing D axis of both
        # operands (transposed-RHS matmul, no explicit k transpose), batched
        # over Bt, f32 accumulation on the MXU.
        w = jnp.einsum("bnd,bmd->bnm", qs, k,
                       precision=mm_precision,
                       preferred_element_type=jnp.float32)       # (Bt, N, N) f32

        # Numerically stable softmax; normalization deferred past the PV matmul.
        w = w - jnp.max(w, axis=-1, keepdims=True)
        p = jnp.exp(w)
        denom = jnp.sum(p, axis=-1, keepdims=True)               # (Bt, N, 1) f32

        pv = jnp.einsum("bnm,bmd->bnd", p.astype(v.dtype), v,
                        precision=mm_precision,
                        preferred_element_type=jnp.float32)      # (Bt, N, D) f32

        # Exact normalization (the approx reciprocal caused the previous
        # mismatch) + residual; dropout = identity (eval mode).
        out = pv * pl.reciprocal(denom, approx=False) + q.astype(jnp.float32)

        # LayerNorm over the feature dim (f32 statistics).
        mean = jnp.mean(out, axis=-1, keepdims=True)
        xc = out - mean
        var = jnp.mean(xc * xc, axis=-1, keepdims=True)
        y = xc * jax.lax.rsqrt(var + eps)
        y = y * gamma_ref[...].astype(jnp.float32) + beta_ref[...].astype(jnp.float32)

        o_ref[...] = y.astype(o_ref.dtype)

    return kernel


def _vmem_budget():
    """(vmem_limit_bytes, picker_budget_bytes) derived from the chip's VMEM."""
    phys = 128 << 20                                    # v5e/v6e; v7x reports 64 MiB
    try:
        phys = int(getattr(pltpu.get_tpu_info(), "vmem_capacity_bytes", phys))
    except Exception:
        pass
    limit = (phys * 5) // 8       # 80 MiB on 128-MiB parts, 40 MiB on v7x (64 MiB)
    budget = (limit * 7) // 10    # headroom for Mosaic internal scratch / dbl-buffers
    return limit, budget


def _pick_batch_tile(B, N, D, itemsize, n_seq_io_per_batch, budget_bytes):
    """Largest batch tile whose per-step working set fits the VMEM budget.

    Per batch element we count:
      * double-buffered (N,D) input/output windows (q, k, v, out, [per-batch pos]),
      * two live (N,N) f32 buffers (scores and exp(scores)),
      * ~5 live (N,D) f32 intermediates (k+pos, q_f32, pv, xc, y).
    """
    per_b = (2 * n_seq_io_per_batch * N * D * itemsize
             + 2 * N * N * 4
             + 5 * N * D * 4)
    bt = max(1, int(budget_bytes // max(per_b, 1)))
    # Keep grid length >= 2 whenever B >= 2 so the "parallel" batch axis can
    # shard across v7x's two TensorCores (one extra ~0.35us step on 1-TC chips).
    if B >= 2:
        bt = min(bt, max(1, B // 2))
    return min(bt, B)


def simplified_attn(q, k, v, pos_embed=None, gamma=None, beta=None, eps=1e-5):
    """Pallas implementation of SimplifiedAttn.forward (eval mode)."""
    B, N, D = q.shape
    if gamma is None:
        gamma = jnp.ones((D,), jnp.float32)             # nn.LayerNorm default init
    if beta is None:
        beta = jnp.zeros((D,), jnp.float32)
    gamma2d = jnp.asarray(gamma, jnp.float32).reshape(1, D)
    beta2d = jnp.asarray(beta, jnp.float32).reshape(1, D)

    has_pos = pos_embed is not None
    pos_per_batch = False
    if has_pos:
        pos_embed = jnp.asarray(pos_embed, q.dtype)
        if pos_embed.ndim == 2:
            pos_embed = pos_embed[None]
        if pos_embed.shape[0] not in (1, B):
            raise ValueError("pos_embed batch dim must be 1 or B")
        pos_per_batch = (pos_embed.shape[0] == B) and (B != 1)

    itemsize = jnp.dtype(q.dtype).itemsize
    vmem_limit, budget = _vmem_budget()
    n_seq_io = 4 + (1 if pos_per_batch else 0)          # q, k, v, out (+ per-batch pos)
    bt = _pick_batch_tile(B, N, D, itemsize, n_seq_io, budget)

    # Pad B up to a multiple of bt instead of forcing bt to divide B.
    grid_b = pl.cdiv(B, bt)
    B_pad = grid_b * bt
    if B_pad != B:
        pad = ((0, B_pad - B), (0, 0), (0, 0))
        q = jnp.pad(q, pad)
        k = jnp.pad(k, pad)
        v = jnp.pad(v, pad)
        if has_pos and pos_per_batch:
            pos_embed = jnp.pad(pos_embed, pad)

    # f32 inputs: full-precision MXU emulation so the kernel matches an f32
    # reference; sub-32-bit inputs use the native single pass.
    mm_precision = (jax.lax.Precision.HIGHEST if q.dtype == jnp.float32
                    else jax.lax.Precision.DEFAULT)

    scale = 1.0 / sqrt(D)
    kernel = _make_kernel(has_pos, scale, eps, mm_precision)

    seq_spec = pl.BlockSpec((bt, N, D), lambda b: (b, 0, 0))
    shared_pos_spec = pl.BlockSpec((1, N, D), lambda b: (0, 0, 0))
    par_spec = pl.BlockSpec((1, D), lambda b: (0, 0))

    in_specs = [seq_spec, seq_spec, seq_spec]
    args = [q, k, v]
    if has_pos:
        in_specs.append(seq_spec if pos_per_batch else shared_pos_spec)
        args.append(pos_embed)
    in_specs += [par_spec, par_spec]
    args += [gamma2d, beta2d]

    out = pl.pallas_call(
        kernel,
        out_shape=jax.ShapeDtypeStruct((B_pad, N, D), q.dtype),
        grid_spec=pltpu.PrefetchScalarGridSpec(
            num_scalar_prefetch=0,
            grid=(grid_b,),
            in_specs=in_specs,
            out_specs=seq_spec,
        ),
        compiler_params=pltpu.CompilerParams(
            dimension_semantics=("parallel",),
            vmem_limit_bytes=vmem_limit,
        ),
    )(*args)
    return out[:B] if B_pad != B else out


def _reference(q, k, v, pos_embed, gamma, beta, eps=1e-5):
    """Pure-JAX reference mirroring the PyTorch forward (eval mode)."""
    D = q.shape[-1]
    prec = (jax.lax.Precision.HIGHEST if q.dtype == jnp.float32
            else jax.lax.Precision.DEFAULT)
    if pos_embed is not None:
        k = k + pos_embed
    w = jnp.einsum("bnd,bmd->bnm", q, k, precision=prec) / sqrt(D)
    w = jax.nn.softmax(w, axis=-1)
    out = jnp.einsum("bnm,bmd->bnd", w, v, precision=prec) + q
    mean = out.mean(-1, keepdims=True)
    var = ((out - mean) ** 2).mean(-1, keepdims=True)
    return (out - mean) / jnp.sqrt(var + eps) * gamma + beta


if __name__ == "__main__":
    key = jax.random.PRNGKey(0)
    B, N, D = 2, 8, 32          # dim = 32
    kq, kk, kv, kp = jax.random.split(key, 4)
    q = jax.random.normal(kq, (B, N, D), jnp.float32)
    k = jax.random.normal(kk, (B, N, D), jnp.float32)
    v = jax.random.normal(kv, (B, N, D), jnp.float32)
    pos = jax.random.normal(kp, (B, N, D), jnp.float32)

    # Deterministic LayerNorm params (PyTorch default init: ones / zeros).
    gamma = jnp.ones((D,), jnp.float32)
    beta = jnp.zeros((D,), jnp.float32)

    TOL = dict(atol=5e-3, rtol=5e-3)  # headroom for MXU f32-emulation rounding

    # Tensor pos_embed branch.
    out = jax.block_until_ready(simplified_attn(q, k, v, pos, gamma, beta))
    ref = _reference(q, k, v, pos, gamma, beta)
    assert out.shape == (B, N, D)
    assert jnp.allclose(out, ref, **TOL), "mismatch vs reference (pos)"

    # pos_embed=None branch (compiles the variant without the pos input).
    out0 = jax.block_until_ready(simplified_attn(q, k, v, None, gamma, beta))
    ref0 = _reference(q, k, v, None, gamma, beta)
    assert jnp.allclose(out0, ref0, **TOL), "mismatch vs reference (no pos)"

    # Awkward batch size (B=5): exercises the pad-to-multiple-of-bt path.
    B2 = 5
    q2 = jax.random.normal(kq, (B2, N, D), jnp.float32)
    k2 = jax.random.normal(kk, (B2, N, D), jnp.float32)
    v2 = jax.random.normal(kv, (B2, N, D), jnp.float32)
    out2 = jax.block_until_ready(simplified_attn(q2, k2, v2, None, gamma, beta))
    ref2 = _reference(q2, k2, v2, None, gamma, beta)
    assert out2.shape == (B2, N, D)
    assert jnp.allclose(out2, ref2, **TOL), "mismatch vs reference (padded batch)"

    print("KERNEL_OK")
</pallas_src>

<mosaic_0001>
module attributes {stable_mosaic.version = 11 : i64} {
  func.func @kernel(%arg0: i32, %arg1: memref<1x8x32xf32, #tpu.memory_space<vmem>>, %arg2: memref<1x8x32xf32, #tpu.memory_space<vmem>>, %arg3: memref<1x8x32xf32, #tpu.memory_space<vmem>>, %arg4: memref<1x8x32xf32, #tpu.memory_space<vmem>>, %arg5: memref<1x32xf32, #tpu.memory_space<vmem>>, %arg6: memref<1x32xf32, #tpu.memory_space<vmem>>, %arg7: memref<1x8x32xf32, #tpu.memory_space<vmem>>) attributes {dimension_semantics = [#tpu.dimension_semantics<parallel>], iteration_bounds = array<i64: 2>, scalar_prefetch = 0 : i64, scratch_operands = 0 : i64, tpu.core_type = #tpu.core_type<tc>, window_params = [{transform_indices = @transform_0, window_bounds = array<i64: 1, 8, 32>}, {transform_indices = @transform_1, window_bounds = array<i64: 1, 8, 32>}, {transform_indices = @transform_2, window_bounds = array<i64: 1, 8, 32>}, {transform_indices = @transform_3, window_bounds = array<i64: 1, 8, 32>}, {pipeline_mode = #tpu.pipeline_mode<synchronous>, transform_indices = @transform_4, window_bounds = array<i64: 1, 32>}, {pipeline_mode = #tpu.pipeline_mode<synchronous>, transform_indices = @transform_5, window_bounds = array<i64: 1, 32>}, {transform_indices = @transform_6, window_bounds = array<i64: 1, 8, 32>}]} {
    %c0 = arith.constant 0 : index
    %c0_0 = arith.constant 0 : index
    %c0_1 = arith.constant 0 : index
    %0 = vector.load %arg1[%c0, %c0_0, %c0_1] : memref<1x8x32xf32, #tpu.memory_space<vmem>>, vector<1x8x32xf32>
    %c0_2 = arith.constant 0 : index
    %c0_3 = arith.constant 0 : index
    %c0_4 = arith.constant 0 : index
    %1 = vector.load %arg2[%c0_2, %c0_3, %c0_4] : memref<1x8x32xf32, #tpu.memory_space<vmem>>, vector<1x8x32xf32>
    %c0_5 = arith.constant 0 : index
    %c0_6 = arith.constant 0 : index
    %c0_7 = arith.constant 0 : index
    %2 = vector.load %arg4[%c0_5, %c0_6, %c0_7] : memref<1x8x32xf32, #tpu.memory_space<vmem>>, vector<1x8x32xf32>
    %3 = arith.addf %1, %2 : vector<1x8x32xf32>
    %c0_8 = arith.constant 0 : index
    %c0_9 = arith.constant 0 : index
    %c0_10 = arith.constant 0 : index
    %4 = vector.load %arg3[%c0_8, %c0_9, %c0_10] : memref<1x8x32xf32, #tpu.memory_space<vmem>>, vector<1x8x32xf32>
    %cst = arith.constant 0.176776692 : f32
    %5 = vector.broadcast %cst : f32 to vector<1x8x32xf32>
    %6 = arith.mulf %0, %5 : vector<1x8x32xf32>
    "tpu.trace_start"() <{level = 10 : i32, message = "bnd,bmd->bnm"}> : () -> ()
    %cst_11 = arith.constant dense<0.000000e+00> : vector<1x8x8xf32>
    %7 = tpu.matmul %6, %3, %cst_11 {dimension_numbers = #tpu.dot_dimension_numbers<[2], [2], [1], [1], [0, 0, 0, 1, 1, 1], [0], [0]>, precision = #tpu.contract_precision<fp32>} : vector<1x8x32xf32>, vector<1x8x32xf32>, vector<1x8x8xf32> -> vector<1x8x8xf32>
    "tpu.trace_stop"() : () -> ()
    %cst_12 = arith.constant dense<0xFF800000> : vector<1x8xf32>
    %8 = vector.multi_reduction <maximumf>, %7, %cst_12 [2] : vector<1x8x8xf32> to vector<1x8xf32>
    %9 = vector.shape_cast %8 : vector<1x8xf32> to vector<1x8x1xf32>
    %10 = vector.broadcast %9 : vector<1x8x1xf32> to vector<1x8x8xf32>
    %11 = arith.subf %7, %10 : vector<1x8x8xf32>
    %12 = math.exp %11 : vector<1x8x8xf32>
    %cst_13 = arith.constant dense<0.000000e+00> : vector<1x8xf32>
    %13 = vector.multi_reduction <add>, %12, %cst_13 [2] : vector<1x8x8xf32> to vector<1x8xf32>
    %14 = vector.shape_cast %13 : vector<1x8xf32> to vector<1x8x1xf32>
    "tpu.trace_start"() <{level = 10 : i32, message = "bnm,bmd->bnd"}> : () -> ()
    %cst_14 = arith.constant dense<0.000000e+00> : vector<1x8x32xf32>
    %15 = tpu.matmul %12, %4, %cst_14 {dimension_numbers = #tpu.dot_dimension_numbers<[2], [1], [1], [2], [0, 0, 0, 1, 1, 2], [0], [0]>, precision = #tpu.contract_precision<fp32>} : vector<1x8x8xf32>, vector<1x8x32xf32>, vector<1x8x32xf32> -> vector<1x8x32xf32>
    "tpu.trace_stop"() : () -> ()
    %16 = tpu.reciprocal %14 : vector<1x8x1xf32> -> vector<1x8x1xf32>
    %17 = vector.broadcast %16 : vector<1x8x1xf32> to vector<1x8x32xf32>
    %18 = arith.mulf %15, %17 : vector<1x8x32xf32>
    %19 = arith.addf %18, %0 : vector<1x8x32xf32>
    %cst_15 = arith.constant dense<0.000000e+00> : vector<1x8xf32>
    %20 = vector.multi_reduction <add>, %19, %cst_15 [2] : vector<1x8x32xf32> to vector<1x8xf32>
    %21 = vector.shape_cast %20 : vector<1x8xf32> to vector<1x8x1xf32>
    %cst_16 = arith.constant 3.200000e+01 : f32
    %22 = vector.broadcast %cst_16 : f32 to vector<1x8x1xf32>
    %23 = arith.divf %21, %22 : vector<1x8x1xf32>
    %24 = vector.broadcast %23 : vector<1x8x1xf32> to vector<1x8x32xf32>
    %25 = arith.subf %19, %24 : vector<1x8x32xf32>
    %26 = arith.mulf %25, %25 : vector<1x8x32xf32>
    %cst_17 = arith.constant dense<0.000000e+00> : vector<1x8xf32>
    %27 = vector.multi_reduction <add>, %26, %cst_17 [2] : vector<1x8x32xf32> to vector<1x8xf32>
    %28 = vector.shape_cast %27 : vector<1x8xf32> to vector<1x8x1xf32>
    %cst_18 = arith.constant 3.200000e+01 : f32
    %29 = vector.broadcast %cst_18 : f32 to vector<1x8x1xf32>
    %30 = arith.divf %28, %29 : vector<1x8x1xf32>
    %cst_19 = arith.constant 9.99999974E-6 : f32
    %31 = vector.broadcast %cst_19 : f32 to vector<1x8x1xf32>
    %32 = arith.addf %30, %31 : vector<1x8x1xf32>
    %33 = math.rsqrt %32 : vector<1x8x1xf32>
    %34 = vector.broadcast %33 : vector<1x8x1xf32> to vector<1x8x32xf32>
    %35 = arith.mulf %25, %34 : vector<1x8x32xf32>
    %c0_20 = arith.constant 0 : index
    %c0_21 = arith.constant 0 : index
    %36 = vector.load %arg5[%c0_20, %c0_21] : memref<1x32xf32, #tpu.memory_space<vmem>>, vector<1x32xf32>
    %37 = vector.shape_cast %36 : vector<1x32xf32> to vector<1x1x32xf32>
    %38 = vector.broadcast %37 : vector<1x1x32xf32> to vector<1x8x32xf32>
    %39 = arith.mulf %35, %38 : vector<1x8x32xf32>
    %c0_22 = arith.constant 0 : index
    %c0_23 = arith.constant 0 : index
    %40 = vector.load %arg6[%c0_22, %c0_23] : memref<1x32xf32, #tpu.memory_space<vmem>>, vector<1x32xf32>
    %41 = vector.shape_cast %40 : vector<1x32xf32> to vector<1x1x32xf32>
    %42 = vector.broadcast %41 : vector<1x1x32xf32> to vector<1x8x32xf32>
    %43 = arith.addf %39, %42 : vector<1x8x32xf32>
    %c0_24 = arith.constant 0 : index
    %c0_25 = arith.constant 0 : index
    %c0_26 = arith.constant 0 : index
    %44 = vector.load %arg7[%c0_24, %c0_25, %c0_26] : memref<1x8x32xf32, #tpu.memory_space<vmem>>, vector<1x8x32xf32>
    tpu.vector_store %arg7[%c0_24, %c0_25, %c0_26], %43 {strides = array<i32>} : memref<1x8x32xf32, #tpu.memory_space<vmem>>, vector<1x8x32xf32>,
    return
  }
  func.func @transform_0(%arg0: i32) -> (i32, i32, i32) {
    %c0_i32 = arith.constant 0 : i32
    %c0_i32_0 = arith.constant 0 : i32
    %c0_i32_1 = arith.constant 0 : i32
    return %arg0, %c0_i32, %c0_i32_0 : i32, i32, i32
  }
  func.func @transform_1(%arg0: i32) -> (i32, i32, i32) {
    %c0_i32 = arith.constant 0 : i32
    %c0_i32_0 = arith.constant 0 : i32
    %c0_i32_1 = arith.constant 0 : i32
    return %arg0, %c0_i32, %c0_i32_0 : i32, i32, i32
  }
  func.func @transform_2(%arg0: i32) -> (i32, i32, i32) {
    %c0_i32 = arith.constant 0 : i32
    %c0_i32_0 = arith.constant 0 : i32
    %c0_i32_1 = arith.constant 0 : i32
    return %arg0, %c0_i32, %c0_i32_0 : i32, i32, i32
  }
  func.func @transform_3(%arg0: i32) -> (i32, i32, i32) {
    %c0_i32 = arith.constant 0 : i32
    %c0_i32_0 = arith.constant 0 : i32
    %c0_i32_1 = arith.constant 0 : i32
    return %arg0, %c0_i32, %c0_i32_0 : i32, i32, i32
  }
  func.func @transform_4(%arg0: i32) -> (i32, i32) {
    %c0_i32 = arith.constant 0 : i32
    %c0_i32_0 = arith.constant 0 : i32
    %c0_i32_1 = arith.constant 0 : i32
    return %c0_i32, %c0_i32_0 : i32, i32
  }
  func.func @transform_5(%arg0: i32) -> (i32, i32) {
    %c0_i32 = arith.constant 0 : i32
    %c0_i32_0 = arith.constant 0 : i32
    %c0_i32_1 = arith.constant 0 : i32
    return %c0_i32, %c0_i32_0 : i32, i32
  }
  func.func @transform_6(%arg0: i32) -> (i32, i32, i32) {
    %c0_i32 = arith.constant 0 : i32
    %c0_i32_0 = arith.constant 0 : i32
    %c0_i32_1 = arith.constant 0 : i32
    return %arg0, %c0_i32, %c0_i32_0 : i32, i32, i32
  }
}

</mosaic_0001>

<llo_original>
// kernel: tpu_custom_call.1
$region0: #{tpu_custom_call.1}
  #allocation0 [shape = 'u32[]', space=smem, size = 0x4, offset = 0x4, fixed_abs, tag = 'smem constant byte address 0x4 - core index']
  #allocation1 [shape = 'u32[144,128]{1,0:T(1,128)}', space=vmem, size = 0x12000, scoped, tag = 'internal scratch']
  %s0 = inlined_call_operand.hbm [shape: f32[2,8,32], index: 0, kind: input, shape index: {}]
  %s1 = inlined_call_operand.hbm [shape: f32[2,8,32], index: 1, kind: input, shape index: {}]
  %s2 = inlined_call_operand.hbm [shape: f32[2,8,32], index: 2, kind: input, shape index: {}]
  %s3 = inlined_call_operand.hbm [shape: f32[2,8,32], index: 3, kind: input, shape index: {}]
  %s4 = inlined_call_operand.hbm [shape: f32[1,32], index: 4, kind: input, shape index: {}]
  %s5 = inlined_call_operand.hbm [shape: f32[1,32], index: 5, kind: input, shape index: {}]
  %s6 = inlined_call_operand.hbm [shape: f32[2,8,32], index: 6, kind: output, shape index: {}]
  %s7 = sld [smem:[#allocation0]]
  $region81: #{tpu_custom_call.1} parent=0
    _
  %s9 = ssub.s32 1, %s7
  %s10 = scalar_select 0, %s9, %s7
  $region1: #{tpu_custom_call.1} parent=0
    #allocation2 [shape = 'u8[8192]{0}', space=vmem, size = 0x2000, scoped, tag = 'input window, operand 0']
    #allocation3 [shape = 's32[2]{0}', space=sflag, size = 0x8, scoped, tag = 'scoped memory for tpu_custom_call.1']
    #allocation4 [shape = 's32[2]{0}', space=sflag, size = 0x8, scoped, tag = 'scoped memory for tpu_custom_call.1']
    #allocation5 [shape = 'u8[8192]{0}', space=vmem, size = 0x2000, scoped, tag = 'input window, operand 1']
    #allocation6 [shape = 's32[2]{0}', space=sflag, size = 0x8, scoped, tag = 'scoped memory for tpu_custom_call.1']
    #allocation7 [shape = 'u8[8192]{0}', space=vmem, size = 0x2000, scoped, tag = 'input window, operand 2']
    #allocation8 [shape = 'u8[8192]{0}', space=vmem, size = 0x2000, scoped, tag = 'input window, operand 3']
    #allocation9 [shape = 's32[2]{0}', space=sflag, size = 0x8, scoped, tag = 'scoped memory for tpu_custom_call.1']
    #allocation10 [shape = 'u8[512]{0}', space=vmem, size = 0x400, scoped, tag = 'input window, operand 4, single buffered']
    #allocation11 [shape = 'u8[512]{0}', space=vmem, size = 0x400, scoped, tag = 'input window, operand 5, single buffered']
    #allocation12 [shape = 's32[1]{0}', space=sflag, size = 0x4, scoped, tag = 'scoped memory for tpu_custom_call.1']
    #allocation13 [shape = 'u8[8192]{0}', space=vmem, size = 0x2000, scoped, tag = 'output window, operand 0']
    %11 = vsyncpa [#allocation3], 0
    %s12 = scalar_lea.sflag [#allocation3], 1
    %13 = vsyncpa %s12, 0
    %14 = vsyncpa [#allocation6], 0
    %s15 = scalar_lea.sflag [#allocation6], 1
    %16 = vsyncpa %s15, 0
    %17 = vsyncpa [#allocation9], 0
    %s18 = scalar_lea.sflag [#allocation9], 1
    %19 = vsyncpa %s18, 0
    %20 = vsyncpa [#allocation12], 0
    %21 = vsyncpa [#allocation4], 0
    %s22 = scalar_lea.sflag [#allocation4], 1
    %23 = vsyncpa %s22, 0
    loop: start=0, step=1, limit=4
    $region2: #{tpu_custom_call.1} parent=1 // loop_pre_header
      _
    $region3: #{tpu_custom_call.1} parent=1 // loop_header
      %s25 = sphi 0, %s29
      %p26 = scmp.ge.s32.totalorder %s25, 4
      %s35 = sphi 0, %s37
      %s38 = sphi 0, %s35
      %s39 = sphi 0, %s38
      %s55 = sphi 0, %s39
      %s61 = sphi 0, %s63
      %s64 = sphi 0, %s61
      %s65 = sphi 0, %s64
      %s81 = sphi 0, %s65
      %s87 = sphi 0, %s89
      %s90 = sphi 0, %s87
      %s91 = sphi 0, %s90
      %s107 = sphi 0, %s91
      %s113 = sphi 0, %s115
      %s116 = sphi 0, %s113
      %s117 = sphi 0, %s116
      %s133 = sphi 0, %s117
      %s137 = sphi 0, %s137
      %s139 = sphi 0, %s137
      %s140 = sphi 0, %s139
      %s154 = sphi 0, %s140
      %s158 = sphi 0, %s158
      %s160 = sphi 0, %s158
      %s161 = sphi 0, %s160
      %s175 = sphi 0, %s161
      %s181 = sphi 0, %s183
      %s184 = sphi 0, %s181
      %s185 = sphi 0, %s184
      %s201 = sphi 0, %s185
    $region4: #{tpu_custom_call.1} parent=1 // loop_header_branch
      %28 = sbr.rel (%p26) target = $region8
    $region5: #{tpu_custom_call.1} parent=1 // loop_body
      %s30 = ssub.s32 %s25, 1
      %s31 = ssub.s32 %s25, 2
      %s32 = sadd.s32 %s25, 1
      %s33 = ssub.s32 %s25, %s32
      %p34 = scmp.eq.s32.totalorder %s33, 0
      %s36 = sadd.s32 %s35, 1
      %s37 = scalar_select %p34, %s35, %s36
      %p40 = pneg %p34
      %p41 = scmp.eq.s32.totalorder %s25, 1
      %p42 = por %p40, %p41
      %p43 = scmp.ne.s32.totalorder %s35, %s38
      %p44 = scmp.eq.s32.totalorder %s25, 0
      %p45 = por %p43, %p44
      %p46 = scmp.ne.s32.totalorder %s35, %s38
      %p47 = scmp.eq.s32.totalorder %s30, 1
      %p48 = por %p46, %p47
      %p49 = scmp.ne.s32.totalorder %s38, %s39
      %p50 = scmp.eq.s32.totalorder %s30, 0
      %p51 = por %p49, %p50
      %p52 = scmp.ne.s32.totalorder %s38, %s39
      %p53 = scmp.eq.s32.totalorder %s31, 1
      %p54 = por %p52, %p53
      %p56 = scmp.ne.s32.totalorder %s39, %s55
      %p57 = scmp.eq.s32.totalorder %s31, 0
      %p58 = por %p56, %p57
      %s59 = ssub.s32 %s25, %s32
      %p60 = scmp.eq.s32.totalorder %s59, 0
      %s62 = sadd.s32 %s61, 1
      %s63 = scalar_select %p60, %s61, %s62
      %p66 = pneg %p60
      %p67 = scmp.eq.s32.totalorder %s25, 1
      %p68 = por %p66, %p67
      %p69 = scmp.ne.s32.totalorder %s61, %s64
      %p70 = scmp.eq.s32.totalorder %s25, 0
      %p71 = por %p69, %p70
      %p72 = scmp.ne.s32.totalorder %s61, %s64
      %p73 = scmp.eq.s32.totalorder %s30, 1
      %p74 = por %p72, %p73
      %p75 = scmp.ne.s32.totalorder %s64, %s65
      %p76 = scmp.eq.s32.totalorder %s30, 0
      %p77 = por %p75, %p76
      %p78 = scmp.ne.s32.totalorder %s64, %s65
      %p79 = scmp.eq.s32.totalorder %s31, 1
      %p80 = por %p78, %p79
      %p82 = scmp.ne.s32.totalorder %s65, %s81
      %p83 = scmp.eq.s32.totalorder %s31, 0
      %p84 = por %p82, %p83
      %s85 = ssub.s32 %s25, %s32
      %p86 = scmp.eq.s32.totalorder %s85, 0
      %s88 = sadd.s32 %s87, 1
      %s89 = scalar_select %p86, %s87, %s88
      %p92 = pneg %p86
      %p93 = scmp.eq.s32.totalorder %s25, 1
      %p94 = por %p92, %p93
      %p95 = scmp.ne.s32.totalorder %s87, %s90
      %p96 = scmp.eq.s32.totalorder %s25, 0
      %p97 = por %p95, %p96
      %p98 = scmp.ne.s32.totalorder %s87, %s90
      %p99 = scmp.eq.s32.totalorder %s30, 1
      %p100 = por %p98, %p99
      %p101 = scmp.ne.s32.totalorder %s90, %s91
      %p102 = scmp.eq.s32.totalorder %s30, 0
      %p103 = por %p101, %p102
      %p104 = scmp.ne.s32.totalorder %s90, %s91
      %p105 = scmp.eq.s32.totalorder %s31, 1
      %p106 = por %p104, %p105
      %p108 = scmp.ne.s32.totalorder %s91, %s107
      %p109 = scmp.eq.s32.totalorder %s31, 0
      %p110 = por %p108, %p109
      %s111 = ssub.s32 %s25, %s32
      %p112 = scmp.eq.s32.totalorder %s111, 0
      %s114 = sadd.s32 %s113, 1
      %s115 = scalar_select %p112, %s113, %s114
      %p118 = pneg %p112
      %p119 = scmp.eq.s32.totalorder %s25, 1
      %p120 = por %p118, %p119
      %p121 = scmp.ne.s32.totalorder %s113, %s116
      %p122 = scmp.eq.s32.totalorder %s25, 0
      %p123 = por %p121, %p122
      %p124 = scmp.ne.s32.totalorder %s113, %s116
      %p125 = scmp.eq.s32.totalorder %s30, 1
      %p126 = por %p124, %p125
      %p127 = scmp.ne.s32.totalorder %s116, %s117
      %p128 = scmp.eq.s32.totalorder %s30, 0
      %p129 = por %p127, %p128
      %p130 = scmp.ne.s32.totalorder %s116, %s117
      %p131 = scmp.eq.s32.totalorder %s31, 1
      %p132 = por %p130, %p131
      %p134 = scmp.ne.s32.totalorder %s117, %s133
      %p135 = scmp.eq.s32.totalorder %s31, 0
      %p136 = por %p134, %p135
      %s138 = sadd.s32 %s137, 1
      %p141 = scmp.eq.s32.totalorder %s25, 1
      %p142 = scmp.ne.s32.totalorder %s137, %s139
      %p143 = scmp.eq.s32.totalorder %s25, 0
      %p144 = por %p142, %p143
      %p145 = scmp.ne.s32.totalorder %s137, %s139
      %p146 = scmp.eq.s32.totalorder %s30, 1
      %p147 = por %p145, %p146
      %p148 = scmp.ne.s32.totalorder %s139, %s140
      %p149 = scmp.eq.s32.totalorder %s30, 0
      %p150 = por %p148, %p149
      %p151 = scmp.ne.s32.totalorder %s139, %s140
      %p152 = scmp.eq.s32.totalorder %s31, 1
      %p153 = por %p151, %p152
      %p155 = scmp.ne.s32.totalorder %s140, %s154
      %p156 = scmp.eq.s32.totalorder %s31, 0
      %p157 = por %p155, %p156
      %s159 = sadd.s32 %s158, 1
      %p162 = scmp.eq.s32.totalorder %s25, 1
      %p163 = scmp.ne.s32.totalorder %s158, %s160
      %p164 = scmp.eq.s32.totalorder %s25, 0
      %p165 = por %p163, %p164
      %p166 = scmp.ne.s32.totalorder %s158, %s160
      %p167 = scmp.eq.s32.totalorder %s30, 1
      %p168 = por %p166, %p167
      %p169 = scmp.ne.s32.totalorder %s160, %s161
      %p170 = scmp.eq.s32.totalorder %s30, 0
      %p171 = por %p169, %p170
      %p172 = scmp.ne.s32.totalorder %s160, %s161
      %p173 = scmp.eq.s32.totalorder %s31, 1
      %p174 = por %p172, %p173
      %p176 = scmp.ne.s32.totalorder %s161, %s175
      %p177 = scmp.eq.s32.totalorder %s31, 0
      %p178 = por %p176, %p177
      %s179 = ssub.s32 %s25, %s32
      %p180 = scmp.eq.s32.totalorder %s179, 0
      %s182 = sadd.s32 %s181, 1
      %s183 = scalar_select %p180, %s181, %s182
      %p186 = pneg %p180
      %p187 = scmp.eq.s32.totalorder %s25, 1
      %p188 = por %p186, %p187
      %p189 = scmp.ne.s32.totalorder %s181, %s184
      %p190 = scmp.eq.s32.totalorder %s25, 0
      %p191 = por %p189, %p190
      %p192 = scmp.ne.s32.totalorder %s181, %s184
      %p193 = scmp.eq.s32.totalorder %s30, 1
      %p194 = por %p192, %p193
      %p195 = scmp.ne.s32.totalorder %s184, %s185
      %p196 = scmp.eq.s32.totalorder %s30, 0
      %p197 = por %p195, %p196
      %p198 = scmp.ne.s32.totalorder %s184, %s185
      %p199 = scmp.eq.s32.totalorder %s31, 1
      %p200 = por %p198, %p199
      %p202 = scmp.ne.s32.totalorder %s185, %s201
      %p203 = scmp.eq.s32.totalorder %s31, 0
      %p204 = por %p202, %p203
      %p205 = scmp.le.s32.totalorder 1, %s25
      %p206 = scmp.lt.s32.totalorder %s25, 3
      %p207 = pnand %p205, %p206
      %p208 = pneg %p207
      // Predicated region
      $region9: #{tpu_custom_call.1} parent=5 // pred_check
        _
      $region10: #{tpu_custom_call.1} parent=5 // pred_check_branch
        %210 = sbr.rel (%p207) target = $region12
      $region11: #{tpu_custom_call.1} parent=5 // pred_region
        %s211 = ssub.s32 %s25, 1
        // Predicated region
        $region13: #{tpu_custom_call.1} parent=11 // pred_check
          %p212 = pneg %p150
        $region14: #{tpu_custom_call.1} parent=11 // pred_check_branch
          %214 = sbr.rel (%p212) target = $region16
        $region15: #{tpu_custom_call.1} parent=11 // pred_region
          %s216 = ssub.s32 16, 16
          %217 = vsyncadd [#allocation9], %s216
          %s219 = sshll.u32 [#allocation10], 4
          %s220 = int_to_ptr.vmem [resolvable:$true] %s219
          %222 = dma.hbm_to_vmem [thread:$0]  %s4, 16, %s220, [#allocation9]
        $region16: #{tpu_custom_call.1} parent=11 // pred_fallthru
          _
        // Predicated region
        $region17: #{tpu_custom_call.1} parent=11 // pred_check
          %p223 = pneg %p171
        $region18: #{tpu_custom_call.1} parent=11 // pred_check_branch
          %225 = sbr.rel (%p223) target = $region20
        $region19: #{tpu_custom_call.1} parent=11 // pred_region
          %s227 = ssub.s32 16, 16
          %228 = vsyncadd [#allocation12], %s227
          %s230 = sshll.u32 [#allocation11], 4
          %s231 = int_to_ptr.vmem [resolvable:$true] %s230
          %233 = dma.hbm_to_vmem [thread:$0]  %s5, 16, %s231, [#allocation12]
        $region20: #{tpu_custom_call.1} parent=11 // pred_fallthru
          _
      $region12: #{tpu_custom_call.1} parent=5 // pred_fallthru
        _
      %p234 = scmp.lt.s32.totalorder %s25, 2
      // Predicated region
      $region21: #{tpu_custom_call.1} parent=5 // pred_check
        %p235 = pneg %p234
      $region22: #{tpu_custom_call.1} parent=5 // pred_check_branch
        %237 = sbr.rel (%p235) target = $region24
      $region23: #{tpu_custom_call.1} parent=5 // pred_region
        // Predicated region
        $region25: #{tpu_custom_call.1} parent=23 // pred_check
          %p238 = pneg %p45
        $region26: #{tpu_custom_call.1} parent=23 // pred_check_branch
          %240 = sbr.rel (%p238) target = $region28
        $region27: #{tpu_custom_call.1} parent=23 // pred_region
          %s241 = sand.u32 %s35, 1
          %s242 = scalar_lea.sflag [#allocation3], %s241
          %s243 = sand.u32 %s35, 1
          %s244 = smul.addr %s243, 8
          %s245 = scalar_lea.vmem [#allocation2], %s244
          %s247 = ssub.s32 128, 128
          %248 = vsyncadd %s242, %s247
          %s249 = smul.addr %s25, 128
          %s250 = scalar_lea.hbm %s0, %s249
          %s252 = sshll.u32 %s245, 4
          %s253 = int_to_ptr.vmem [resolvable:$true] %s252
          %255 = dma.hbm_to_vmem [thread:$0]  %s250, 128, %s253, %s242
        $region28: #{tpu_custom_call.1} parent=23 // pred_fallthru
          _
        // Predicated region
        $region29: #{tpu_custom_call.1} parent=23 // pred_check
          %p256 = pneg %p71
        $region30: #{tpu_custom_call.1} parent=23 // pred_check_branch
          %258 = sbr.rel (%p256) target = $region32
        $region31: #{tpu_custom_call.1} parent=23 // pred_region
          %s259 = sand.u32 %s25, 1
          %s260 = scalar_lea.sflag [#allocation6], %s259
          %s261 = sand.u32 %s61, 1
          %s262 = smul.addr %s261, 8
          %s263 = scalar_lea.vmem [#allocation5], %s262
          %s265 = ssub.s32 128, 128
          %266 = vsyncadd %s260, %s265
          %s267 = smul.addr %s25, 128
          %s268 = scalar_lea.hbm %s1, %s267
          %s270 = sshll.u32 %s263, 4
          %s271 = int_to_ptr.vmem [resolvable:$true] %s270
          %273 = dma.hbm_to_vmem [thread:$0]  %s268, 128, %s271, %s260
        $region32: #{tpu_custom_call.1} parent=23 // pred_fallthru
          _
        // Predicated region
        $region33: #{tpu_custom_call.1} parent=23 // pred_check
          %p274 = pneg %p97
        $region34: #{tpu_custom_call.1} parent=23 // pred_check_branch
          %276 = sbr.rel (%p274) target = $region36
        $region35: #{tpu_custom_call.1} parent=23 // pred_region
          %s277 = sand.u32 %s25, 1
          %s278 = scalar_lea.sflag [#allocation6], %s277
          %s279 = sand.u32 %s87, 1
          %s280 = smul.addr %s279, 8
          %s281 = scalar_lea.vmem [#allocation7], %s280
          %s283 = ssub.s32 128, 128
          %284 = vsyncadd %s278, %s283
          %s285 = smul.addr %s25, 128
          %s286 = scalar_lea.hbm %s2, %s285
          %s288 = sshll.u32 %s281, 4
          %s289 = int_to_ptr.vmem [resolvable:$true] %s288
          %291 = dma.hbm_to_vmem [thread:$0]  %s286, 128, %s289, %s278
        $region36: #{tpu_custom_call.1} parent=23 // pred_fallthru
          _
        // Predicated region
        $region37: #{tpu_custom_call.1} parent=23 // pred_check
          %p292 = pneg %p123
        $region38: #{tpu_custom_call.1} parent=23 // pred_check_branch
          %294 = sbr.rel (%p292) target = $region40
        $region39: #{tpu_custom_call.1} parent=23 // pred_region
          %s295 = sand.u32 %s25, 1
          %s296 = scalar_lea.sflag [#allocation9], %s295
          %s297 = sand.u32 %s113, 1
          %s298 = smul.addr %s297, 8
          %s299 = scalar_lea.vmem [#allocation8], %s298
          %s301 = ssub.s32 128, 128
          %302 = vsyncadd %s296, %s301
          %s303 = smul.addr %s25, 128
          %s304 = scalar_lea.hbm %s3, %s303
          %s306 = sshll.u32 %s299, 4
          %s307 = int_to_ptr.vmem [resolvable:$true] %s306
          %309 = dma.hbm_to_vmem [thread:$0]  %s304, 128, %s307, %s296
        $region40: #{tpu_custom_call.1} parent=23 // pred_fallthru
          _
      $region24: #{tpu_custom_call.1} parent=5 // pred_fallthru
        _
      %p310 = scmp.le.s32.totalorder 1, %s25
      %p311 = scmp.lt.s32.totalorder %s25, 3
      %p312 = pnand %p310, %p311
      %p313 = pneg %p312
      // Predicated region
      $region41: #{tpu_custom_call.1} parent=5 // pred_check
        _
      $region42: #{tpu_custom_call.1} parent=5 // pred_check_branch
        %315 = sbr.rel (%p312) target = $region44
      $region43: #{tpu_custom_call.1} parent=5 // pred_region
        %s316 = ssub.s32 %s25, 1
        %s317 = sand.u32 %s38, 1
        %s318 = scalar_lea.sflag [#allocation3], %s317
        %s319 = sand.u32 %s38, 1
        %s320 = smul.addr %s319, 8
        %s321 = scalar_lea.vmem [#allocation2], %s320
        // Predicated region
        $region45: #{tpu_custom_call.1} parent=43 // pred_check
          %p322 = pneg %p51
        $region46: #{tpu_custom_call.1} parent=43 // pred_check_branch
          %324 = sbr.rel (%p322) target = $region48
        $region47: #{tpu_custom_call.1} parent=43 // pred_region
          %325 = dma.done %s318, 128
        $region48: #{tpu_custom_call.1} parent=43 // pred_fallthru
          _
        %s326 = sand.u32 %s30, 1
        %s327 = scalar_lea.sflag [#allocation6], %s326
        %s328 = sand.u32 %s64, 1
        %s329 = smul.addr %s328, 8
        %s330 = scalar_lea.vmem [#allocation5], %s329
        // Predicated region
        $region49: #{tpu_custom_call.1} parent=43 // pred_check
          %p331 = pneg %p77
        $region50: #{tpu_custom_call.1} parent=43 // pred_check_branch
          %333 = sbr.rel (%p331) target = $region52
        $region51: #{tpu_custom_call.1} parent=43 // pred_region
          %334 = dma.done %s327, 128
        $region52: #{tpu_custom_call.1} parent=43 // pred_fallthru
          _
        %s335 = sand.u32 %s30, 1
        %s336 = scalar_lea.sflag [#allocation6], %s335
        %s337 = sand.u32 %s90, 1
        %s338 = smul.addr %s337, 8
        %s339 = scalar_lea.vmem [#allocation7], %s338
        // Predicated region
        $region53: #{tpu_custom_call.1} parent=43 // pred_check
          %p340 = pneg %p103
        $region54: #{tpu_custom_call.1} parent=43 // pred_check_branch
          %342 = sbr.rel (%p340) target = $region56
        $region55: #{tpu_custom_call.1} parent=43 // pred_region
          %343 = dma.done %s336, 128
        $region56: #{tpu_custom_call.1} parent=43 // pred_fallthru
          _
        %s344 = sand.u32 %s30, 1
        %s345 = scalar_lea.sflag [#allocation9], %s344
        %s346 = sand.u32 %s116, 1
        %s347 = smul.addr %s346, 8
        %s348 = scalar_lea.vmem [#allocation8], %s347
        // Predicated region
        $region57: #{tpu_custom_call.1} parent=43 // pred_check
          %p349 = pneg %p129
        $region58: #{tpu_custom_call.1} parent=43 // pred_check_branch
          %351 = sbr.rel (%p349) target = $region60
        $region59: #{tpu_custom_call.1} parent=43 // pred_region
          %352 = dma.done %s345, 128
        $region60: #{tpu_custom_call.1} parent=43 // pred_fallthru
          _
        // Predicated region
        $region61: #{tpu_custom_call.1} parent=43 // pred_check
          %p353 = pneg %p150
        $region62: #{tpu_custom_call.1} parent=43 // pred_check_branch
          %355 = sbr.rel (%p353) target = $region64
        $region63: #{tpu_custom_call.1} parent=43 // pred_region
          %356 = dma.done [#allocation9], 16
        $region64: #{tpu_custom_call.1} parent=43 // pred_fallthru
          _
        // Predicated region
        $region65: #{tpu_custom_call.1} parent=43 // pred_check
          %p357 = pneg %p171
        $region66: #{tpu_custom_call.1} parent=43 // pred_check_branch
          %359 = sbr.rel (%p357) target = $region68
        $region67: #{tpu_custom_call.1} parent=43 // pred_region
          %360 = dma.done [#allocation12], 16
        $region68: #{tpu_custom_call.1} parent=43 // pred_fallthru
          _
        %s361 = sand.u32 %s38, 1
        %s362 = scalar_lea.sflag [#allocation3], %s361
        %s363 = sand.u32 %s38, 1
        %s364 = smul.addr %s363, 8
        %s365 = scalar_lea.vmem [#allocation2], %s364
        %p366 = pneg %p51
        %p367 = pneg %p48
        %s368 = sand.u32 %s30, 1
        %s369 = scalar_lea.sflag [#allocation6], %s368
        %s370 = sand.u32 %s64, 1
        %s371 = smul.addr %s370, 8
        %s372 = scalar_lea.vmem [#allocation5], %s371
        %p373 = pneg %p77
        %p374 = pneg %p74
        %s375 = sand.u32 %s30, 1
        %s376 = scalar_lea.sflag [#allocation6], %s375
        %s377 = sand.u32 %s90, 1
        %s378 = smul.addr %s377, 8
        %s379 = scalar_lea.vmem [#allocation7], %s378
        %p380 = pneg %p103
        %p381 = pneg %p100
        %s382 = sand.u32 %s30, 1
        %s383 = scalar_lea.sflag [#allocation9], %s382
        %s384 = sand.u32 %s116, 1
        %s385 = smul.addr %s384, 8
        %s386 = scalar_lea.vmem [#allocation8], %s385
        %p387 = pneg %p129
        %p388 = pneg %p126
        %p389 = pneg %p150
        %p390 = pneg %p147
        %p391 = pneg %p171
        %p392 = pneg %p168
        %p393 = pneg %p197
        %p394 = pneg %p194
        %s395 = sand.u32 %s184, 1
        %s396 = scalar_lea.sflag [#allocation4], %s395
        %s397 = sand.u32 %s184, 1
        %s398 = smul.addr %s397, 8
        %s399 = scalar_lea.vmem [#allocation13], %s398
        %v400 = vld [vmem:[%s321] sm:$0xff]
        %v401 = vld [vmem:[%s330] sm:$0xff]
        %v402 = vld [vmem:[%s348] sm:$0xff]
        %v403 = vadd.f32 %v401, %v402
        %v404 = vld [vmem:[%s339] sm:$0xff]
        %v405 = vmul.f32 %v400, 0.17677669
        %vm406 = vcmask 261120
        %v408 = vsel %vm406, %v405, 0
        %v411 = vsel %vm406, %v403, 0
        %413 = vmatprep.subr.mxu0 0.0
        %v414 = vand.u32 %v411, 4294901760
        %415 = vmatpush1.xpose.msra.mxu0 %v414
        %416 = vmatprep.subr.mxu0 0.0
        %417 = vmatpush1.xpose.msra.mxu0 0.0
        %418 = vmatprep.subr.mxu0 0.0
        %419 = vmatpush1.xpose.msra.mxu0 0.0
        %420 = vmatprep.subr.mxu0 0.0
        %421 = vmatpush1.xpose.msra.mxu0 0.0
        %422 = vmatprep.subr.mxu0 0.0
        %423 = vmatpush1.xpose.msra.mxu0 0.0
        %424 = vmatprep.subr.mxu0 0.0
        %425 = vmatpush1.xpose.msra.mxu0 0.0
        %426 = vmatprep.subr.mxu0 0.0
        %427 = vmatpush1.xpose.msra.mxu0 0.0
        %428 = vmatprep.subr.mxu0 0.0
        %429 = vmatpush1.xpose.msra.mxu0 0.0
        %430 = vmatprep.subr.mxu0 0.0
        %431 = vmatpush1.xpose.msra.mxu0 0.0
        %432 = vmatprep.subr.mxu0 0.0
        %433 = vmatpush1.xpose.msra.mxu0 0.0
        %434 = vmatprep.subr.mxu0 0.0
        %435 = vmatpush1.xpose.msra.mxu0 0.0
        %436 = vmatprep.subr.mxu0 0.0
        %437 = vmatpush1.xpose.msra.mxu0 0.0
        %438 = vmatprep.subr.mxu0 0.0
        %439 = vmatpush1.xpose.msra.mxu0 0.0
        %440 = vmatprep.subr.mxu0 0.0
        %441 = vmatpush1.xpose.msra.mxu0 0.0
        %442 = vmatprep.subr.mxu0 0.0
        %443 = vmatpush1.xpose.msra.mxu0 0.0
        %444 = vmatprep.subr.mxu0 0.0
        %445 = vmatpush1.xpose.msra.mxu0 0.0
        %446 = vmatprep.subr.mxu0 0.0
        %447 = vmatpush1.xpose.msra.mxu0 0.0
        %448 = vmatprep.subr.mxu0 0.0
        %449 = vmatpush1.xpose.msra.mxu0 0.0
        %450 = vmatprep.subr.mxu0 0.0
        %451 = vmatpush1.xpose.msra.mxu0 0.0
        %452 = vmatprep.subr.mxu0 0.0
        %453 = vmatpush1.xpose.msra.mxu0 0.0
        %454 = vmatprep.subr.mxu0 0.0
        %455 = vmatpush1.xpose.msra.mxu0 0.0
        %456 = vmatprep.subr.mxu0 0.0
        %457 = vmatpush1.xpose.msra.mxu0 0.0
        %458 = vmatprep.subr.mxu0 0.0
        %459 = vmatpush1.xpose.msra.mxu0 0.0
        %460 = vmatprep.subr.mxu0 0.0
        %461 = vmatpush1.xpose.msra.mxu0 0.0
        %462 = vmatprep.subr.mxu0 0.0
        %463 = vmatpush1.xpose.msra.mxu0 0.0
        %464 = vmatprep.subr.mxu0 0.0
        %465 = vmatpush1.xpose.msra.mxu0 0.0
        %466 = vmatprep.subr.mxu0 0.0
        %467 = vmatpush1.xpose.msra.mxu0 0.0
        %468 = vmatprep.subr.mxu0 0.0
        %469 = vmatpush1.xpose.msra.mxu0 0.0
        %470 = vmatprep.subr.mxu0 0.0
        %471 = vmatpush1.xpose.msra.mxu0 0.0
        %472 = vmatprep.subr.mxu0 0.0
        %473 = vmatpush1.xpose.msra.mxu0 0.0
        %474 = vmatprep.subr.mxu0 0.0
        %475 = vmatpush1.xpose.msra.mxu0 0.0
        %476 = vmatprep.subr.mxu0 0.0
        %477 = vmatpush1.xpose.msra.mxu0 0.0
        %478 = vmatprep.mubr.f32.mxu0 0.0
        %v479 = vand.u32 %v408, 4294901760
        %v480 = vsub.f32 %v408, %v479
        %v481 = vand.u32 %v480, 4294901760
        %v482 = vsub.f32 %v480, %v481
        %v483 = vand.u32 %v482, 4294901760
        %484 = vmatmul.mubr.f32.gmra.mrb[0].mxu0 %v483
        %v485 = vpop.f32.mrb[0].mxu0
        %v486 = vadd.f32 0.0, %v485
        %v487 = vpop.f32.mrb[0].mxu0
        %488 = vdwg.mxu0
        %489 = vmatprep.subr.mxu0 0.0
        %v490 = vand.u32 %v411, 4294901760
        %v491 = vsub.f32 %v411, %v490
        %v492 = vand.u32 %v491, 4294901760
        %v493 = vsub.f32 %v491, %v492
        %v494 = vand.u32 %v493, 4294901760
        %495 = vmatpush1.xpose.msra.mxu0 %v494
        %496 = vmatprep.subr.mxu0 0.0
        %497 = vmatpush1.xpose.msra.mxu0 0.0
        %498 = vmatprep.subr.mxu0 0.0
        %499 = vmatpush1.xpose.msra.mxu0 0.0
        %500 = vmatprep.subr.mxu0 0.0
        %501 = vmatpush1.xpose.msra.mxu0 0.0
        %502 = vmatprep.subr.mxu0 0.0
        %503 = vmatpush1.xpose.msra.mxu0 0.0
        %504 = vmatprep.subr.mxu0 0.0
        %505 = vmatpush1.xpose.msra.mxu0 0.0
        %506 = vmatprep.subr.mxu0 0.0
        %507 = vmatpush1.xpose.msra.mxu0 0.0
        %508 = vmatprep.subr.mxu0 0.0
        %509 = vmatpush1.xpose.msra.mxu0 0.0
        %510 = vmatprep.subr.mxu0 0.0
        %511 = vmatpush1.xpose.msra.mxu0 0.0
        %512 = vmatprep.subr.mxu0 0.0
        %513 = vmatpush1.xpose.msra.mxu0 0.0
        %514 = vmatprep.subr.mxu0 0.0
        %515 = vmatpush1.xpose.msra.mxu0 0.0
        %516 = vmatprep.subr.mxu0 0.0
        %517 = vmatpush1.xpose.msra.mxu0 0.0
        %518 = vmatprep.subr.mxu0 0.0
        %519 = vmatpush1.xpose.msra.mxu0 0.0
        %520 = vmatprep.subr.mxu0 0.0
        %521 = vmatpush1.xpose.msra.mxu0 0.0
        %522 = vmatprep.subr.mxu0 0.0
        %523 = vmatpush1.xpose.msra.mxu0 0.0
        %524 = vmatprep.subr.mxu0 0.0
        %525 = vmatpush1.xpose.msra.mxu0 0.0
        %526 = vmatprep.subr.mxu0 0.0
        %527 = vmatpush1.xpose.msra.mxu0 0.0
        %528 = vmatprep.subr.mxu0 0.0
        %529 = vmatpush1.xpose.msra.mxu0 0.0
        %530 = vmatprep.subr.mxu0 0.0
        %531 = vmatpush1.xpose.msra.mxu0 0.0
        %532 = vmatprep.subr.mxu0 0.0
        %533 = vmatpush1.xpose.msra.mxu0 0.0
        %534 = vmatprep.subr.mxu0 0.0
        %535 = vmatpush1.xpose.msra.mxu0 0.0
        %536 = vmatprep.subr.mxu0 0.0
        %537 = vmatpush1.xpose.msra.mxu0 0.0
        %538 = vmatprep.subr.mxu0 0.0
        %539 = vmatpush1.xpose.msra.mxu0 0.0
        %540 = vmatprep.subr.mxu0 0.0
        %541 = vmatpush1.xpose.msra.mxu0 0.0
        %542 = vmatprep.subr.mxu0 0.0
        %543 = vmatpush1.xpose.msra.mxu0 0.0
        %544 = vmatprep.subr.mxu0 0.0
        %545 = vmatpush1.xpose.msra.mxu0 0.0
        %546 = vmatprep.subr.mxu0 0.0
        %547 = vmatpush1.xpose.msra.mxu0 0.0
        %548 = vmatprep.subr.mxu0 0.0
        %549 = vmatpush1.xpose.msra.mxu0 0.0
        %550 = vmatprep.subr.mxu0 0.0
        %551 = vmatpush1.xpose.msra.mxu0 0.0
        %552 = vmatprep.subr.mxu0 0.0
        %553 = vmatpush1.xpose.msra.mxu0 0.0
        %554 = vmatprep.subr.mxu0 0.0
        %555 = vmatpush1.xpose.msra.mxu0 0.0
        %556 = vmatprep.subr.mxu0 0.0
        %557 = vmatpush1.xpose.msra.mxu0 0.0
        %558 = vmatprep.mubr.f32.mxu0 0.0
        %v559 = vand.u32 %v408, 4294901760
        %560 = vmatmul.mubr.f32.gmra.mrb[0].mxu0 %v559
        %v561 = vpop.f32.mrb[0].mxu0
        %v562 = vadd.f32 %v486, %v561
        %v563 = vpop.f32.mrb[0].mxu0
        %564 = vdwg.mxu0
        %565 = vmatprep.subr.mxu0 0.0
        %v566 = vand.u32 %v411, 4294901760
        %v567 = vsub.f32 %v411, %v566
        %568 = vmatpush1.xpose.msra.mxu0 %v567
        %569 = vmatprep.subr.mxu0 0.0
        %570 = vmatpush1.xpose.msra.mxu0 0.0
        %571 = vmatprep.subr.mxu0 0.0
        %572 = vmatpush1.xpose.msra.mxu0 0.0
        %573 = vmatprep.subr.mxu0 0.0
        %574 = vmatpush1.xpose.msra.mxu0 0.0
        %575 = vmatprep.subr.mxu0 0.0
        %576 = vmatpush1.xpose.msra.mxu0 0.0
        %577 = vmatprep.subr.mxu0 0.0
        %578 = vmatpush1.xpose.msra.mxu0 0.0
        %579 = vmatprep.subr.mxu0 0.0
        %580 = vmatpush1.xpose.msra.mxu0 0.0
        %581 = vmatprep.subr.mxu0 0.0
        %582 = vmatpush1.xpose.msra.mxu0 0.0
        %583 = vmatprep.subr.mxu0 0.0
        %584 = vmatpush1.xpose.msra.mxu0 0.0
        %585 = vmatprep.subr.mxu0 0.0
        %586 = vmatpush1.xpose.msra.mxu0 0.0
        %587 = vmatprep.subr.mxu0 0.0
        %588 = vmatpush1.xpose.msra.mxu0 0.0
        %589 = vmatprep.subr.mxu0 0.0
        %590 = vmatpush1.xpose.msra.mxu0 0.0
        %591 = vmatprep.subr.mxu0 0.0
        %592 = vmatpush1.xpose.msra.mxu0 0.0
        %593 = vmatprep.subr.mxu0 0.0
        %594 = vmatpush1.xpose.msra.mxu0 0.0
        %595 = vmatprep.subr.mxu0 0.0
        %596 = vmatpush1.xpose.msra.mxu0 0.0
        %597 = vmatprep.subr.mxu0 0.0
        %598 = vmatpush1.xpose.msra.mxu0 0.0
        %599 = vmatprep.subr.mxu0 0.0
        %600 = vmatpush1.xpose.msra.mxu0 0.0
        %601 = vmatprep.subr.mxu0 0.0
        %602 = vmatpush1.xpose.msra.mxu0 0.0
        %603 = vmatprep.subr.mxu0 0.0
        %604 = vmatpush1.xpose.msra.mxu0 0.0
        %605 = vmatprep.subr.mxu0 0.0
        %606 = vmatpush1.xpose.msra.mxu0 0.0
        %607 = vmatprep.subr.mxu0 0.0
        %608 = vmatpush1.xpose.msra.mxu0 0.0
        %609 = vmatprep.subr.mxu0 0.0
        %610 = vmatpush1.xpose.msra.mxu0 0.0
        %611 = vmatprep.subr.mxu0 0.0
        %612 = vmatpush1.xpose.msra.mxu0 0.0
        %613 = vmatprep.subr.mxu0 0.0
        %614 = vmatpush1.xpose.msra.mxu0 0.0
        %615 = vmatprep.subr.mxu0 0.0
        %616 = vmatpush1.xpose.msra.mxu0 0.0
        %617 = vmatprep.subr.mxu0 0.0
        %618 = vmatpush1.xpose.msra.mxu0 0.0
        %619 = vmatprep.subr.mxu0 0.0
        %620 = vmatpush1.xpose.msra.mxu0 0.0
        %621 = vmatprep.subr.mxu0 0.0
        %622 = vmatpush1.xpose.msra.mxu0 0.0
        %623 = vmatprep.subr.mxu0 0.0
        %624 = vmatpush1.xpose.msra.mxu0 0.0
        %625 = vmatprep.subr.mxu0 0.0
        %626 = vmatpush1.xpose.msra.mxu0 0.0
        %627 = vmatprep.subr.mxu0 0.0
        %628 = vmatpush1.xpose.msra.mxu0 0.0
        %629 = vmatprep.subr.mxu0 0.0
        %630 = vmatpush1.xpose.msra.mxu0 0.0
        %631 = vmatprep.mubr.f32.mxu0 0.0
        %v632 = vand.u32 %v408, 4294901760
        %v633 = vsub.f32 %v408, %v632
        %634 = vmatmul.mubr.f32.gmra.mrb[0].mxu0 %v633
        %v635 = vpop.f32.mrb[0].mxu0
        %v636 = vadd.f32 %v562, %v635
        %v637 = vpop.f32.mrb[0].mxu0
        %638 = vdwg.mxu0
        %639 = vmatprep.subr.mxu0 0.0
        %v640 = vand.u32 %v411, 4294901760
        %641 = vmatpush1.xpose.msra.mxu0 %v640
        %642 = vmatprep.subr.mxu0 0.0
        %643 = vmatpush1.xpose.msra.mxu0 0.0
        %644 = vmatprep.subr.mxu0 0.0
        %645 = vmatpush1.xpose.msra.mxu0 0.0
        %646 = vmatprep.subr.mxu0 0.0
        %647 = vmatpush1.xpose.msra.mxu0 0.0
        %648 = vmatprep.subr.mxu0 0.0
        %649 = vmatpush1.xpose.msra.mxu0 0.0
        %650 = vmatprep.subr.mxu0 0.0
        %651 = vmatpush1.xpose.msra.mxu0 0.0
        %652 = vmatprep.subr.mxu0 0.0
        %653 = vmatpush1.xpose.msra.mxu0 0.0
        %654 = vmatprep.subr.mxu0 0.0
        %655 = vmatpush1.xpose.msra.mxu0 0.0
        %656 = vmatprep.subr.mxu0 0.0
        %657 = vmatpush1.xpose.msra.mxu0 0.0
        %658 = vmatprep.subr.mxu0 0.0
        %659 = vmatpush1.xpose.msra.mxu0 0.0
        %660 = vmatprep.subr.mxu0 0.0
        %661 = vmatpush1.xpose.msra.mxu0 0.0
        %662 = vmatprep.subr.mxu0 0.0
        %663 = vmatpush1.xpose.msra.mxu0 0.0
        %664 = vmatprep.subr.mxu0 0.0
        %665 = vmatpush1.xpose.msra.mxu0 0.0
        %666 = vmatprep.subr.mxu0 0.0
        %667 = vmatpush1.xpose.msra.mxu0 0.0
        %668 = vmatprep.subr.mxu0 0.0
        %669 = vmatpush1.xpose.msra.mxu0 0.0
        %670 = vmatprep.subr.mxu0 0.0
        %671 = vmatpush1.xpose.msra.mxu0 0.0
        %672 = vmatprep.subr.mxu0 0.0
        %673 = vmatpush1.xpose.msra.mxu0 0.0
        %674 = vmatprep.subr.mxu0 0.0
        %675 = vmatpush1.xpose.msra.mxu0 0.0
        %676 = vmatprep.subr.mxu0 0.0
        %677 = vmatpush1.xpose.msra.mxu0 0.0
        %678 = vmatprep.subr.mxu0 0.0
        %679 = vmatpush1.xpose.msra.mxu0 0.0
        %680 = vmatprep.subr.mxu0 0.0
        %681 = vmatpush1.xpose.msra.mxu0 0.0
        %682 = vmatprep.subr.mxu0 0.0
        %683 = vmatpush1.xpose.msra.mxu0 0.0
        %684 = vmatprep.subr.mxu0 0.0
        %685 = vmatpush1.xpose.msra.mxu0 0.0
        %686 = vmatprep.subr.mxu0 0.0
        %687 = vmatpush1.xpose.msra.mxu0 0.0
        %688 = vmatprep.subr.mxu0 0.0
        %689 = vmatpush1.xpose.msra.mxu0 0.0
        %690 = vmatprep.subr.mxu0 0.0
        %691 = vmatpush1.xpose.msra.mxu0 0.0
        %692 = vmatprep.subr.mxu0 0.0
        %693 = vmatpush1.xpose.msra.mxu0 0.0
        %694 = vmatprep.subr.mxu0 0.0
        %695 = vmatpush1.xpose.msra.mxu0 0.0
        %696 = vmatprep.subr.mxu0 0.0
        %697 = vmatpush1.xpose.msra.mxu0 0.0
        %698 = vmatprep.subr.mxu0 0.0
        %699 = vmatpush1.xpose.msra.mxu0 0.0
        %700 = vmatprep.subr.mxu0 0.0
        %701 = vmatpush1.xpose.msra.mxu0 0.0
        %702 = vmatprep.subr.mxu0 0.0
        %703 = vmatpush1.xpose.msra.mxu0 0.0
        %704 = vmatprep.mubr.f32.mxu0 0.0
        %v705 = vand.u32 %v408, 4294901760
        %v706 = vsub.f32 %v408, %v705
        %v707 = vand.u32 %v706, 4294901760
        %708 = vmatmul.mubr.f32.gmra.mrb[0].mxu0 %v707
        %v709 = vpop.f32.mrb[0].mxu0
        %v710 = vadd.f32 %v636, %v709
        %v711 = vpop.f32.mrb[0].mxu0
        %712 = vdwg.mxu0
        %713 = vmatprep.subr.mxu0 0.0
        %v714 = vand.u32 %v411, 4294901760
        %v715 = vsub.f32 %v411, %v714
        %v716 = vand.u32 %v715, 4294901760
        %717 = vmatpush1.xpose.msra.mxu0 %v716
        %718 = vmatprep.subr.mxu0 0.0
        %719 = vmatpush1.xpose.msra.mxu0 0.0
        %720 = vmatprep.subr.mxu0 0.0
        %721 = vmatpush1.xpose.msra.mxu0 0.0
        %722 = vmatprep.subr.mxu0 0.0
        %723 = vmatpush1.xpose.msra.mxu0 0.0
        %724 = vmatprep.subr.mxu0 0.0
        %725 = vmatpush1.xpose.msra.mxu0 0.0
        %726 = vmatprep.subr.mxu0 0.0
        %727 = vmatpush1.xpose.msra.mxu0 0.0
        %728 = vmatprep.subr.mxu0 0.0
        %729 = vmatpush1.xpose.msra.mxu0 0.0
        %730 = vmatprep.subr.mxu0 0.0
        %731 = vmatpush1.xpose.msra.mxu0 0.0
        %732 = vmatprep.subr.mxu0 0.0
        %733 = vmatpush1.xpose.msra.mxu0 0.0
        %734 = vmatprep.subr.mxu0 0.0
        %735 = vmatpush1.xpose.msra.mxu0 0.0
        %736 = vmatprep.subr.mxu0 0.0
        %737 = vmatpush1.xpose.msra.mxu0 0.0
        %738 = vmatprep.subr.mxu0 0.0
        %739 = vmatpush1.xpose.msra.mxu0 0.0
        %740 = vmatprep.subr.mxu0 0.0
        %741 = vmatpush1.xpose.msra.mxu0 0.0
        %742 = vmatprep.subr.mxu0 0.0
        %743 = vmatpush1.xpose.msra.mxu0 0.0
        %744 = vmatprep.subr.mxu0 0.0
        %745 = vmatpush1.xpose.msra.mxu0 0.0
        %746 = vmatprep.subr.mxu0 0.0
        %747 = vmatpush1.xpose.msra.mxu0 0.0
        %748 = vmatprep.subr.mxu0 0.0
        %749 = vmatpush1.xpose.msra.mxu0 0.0
        %750 = vmatprep.subr.mxu0 0.0
        %751 = vmatpush1.xpose.msra.mxu0 0.0
        %752 = vmatprep.subr.mxu0 0.0
        %753 = vmatpush1.xpose.msra.mxu0 0.0
        %754 = vmatprep.subr.mxu0 0.0
        %755 = vmatpush1.xpose.msra.mxu0 0.0
        %756 = vmatprep.subr.mxu0 0.0
        %757 = vmatpush1.xpose.msra.mxu0 0.0
        %758 = vmatprep.subr.mxu0 0.0
        %759 = vmatpush1.xpose.msra.mxu0 0.0
        %760 = vmatprep.subr.mxu0 0.0
        %761 = vmatpush1.xpose.msra.mxu0 0.0
        %762 = vmatprep.subr.mxu0 0.0
        %763 = vmatpush1.xpose.msra.mxu0 0.0
        %764 = vmatprep.subr.mxu0 0.0
        %765 = vmatpush1.xpose.msra.mxu0 0.0
        %766 = vmatprep.subr.mxu0 0.0
        %767 = vmatpush1.xpose.msra.mxu0 0.0
        %768 = vmatprep.subr.mxu0 0.0
        %769 = vmatpush1.xpose.msra.mxu0 0.0
        %770 = vmatprep.subr.mxu0 0.0
        %771 = vmatpush1.xpose.msra.mxu0 0.0
        %772 = vmatprep.subr.mxu0 0.0
        %773 = vmatpush1.xpose.msra.mxu0 0.0
        %774 = vmatprep.subr.mxu0 0.0
        %775 = vmatpush1.xpose.msra.mxu0 0.0
        %776 = vmatprep.subr.mxu0 0.0
        %777 = vmatpush1.xpose.msra.mxu0 0.0
        %778 = vmatprep.subr.mxu0 0.0
        %779 = vmatpush1.xpose.msra.mxu0 0.0
        %780 = vmatprep.mubr.f32.mxu0 0.0
        %v781 = vand.u32 %v408, 4294901760
        %782 = vmatmul.mubr.f32.gmra.mrb[0].mxu0 %v781
        %v783 = vpop.f32.mrb[0].mxu0
        %v784 = vadd.f32 %v710, %v783
        %v785 = vpop.f32.mrb[0].mxu0
        %786 = vdwg.mxu0
        %787 = vmatprep.subr.mxu0 0.0
        %v788 = vand.u32 %v411, 4294901760
        %789 = vmatpush1.xpose.msra.mxu0 %v788
        %790 = vmatprep.subr.mxu0 0.0
        %791 = vmatpush1.xpose.msra.mxu0 0.0
        %792 = vmatprep.subr.mxu0 0.0
        %793 = vmatpush1.xpose.msra.mxu0 0.0
        %794 = vmatprep.subr.mxu0 0.0
        %795 = vmatpush1.xpose.msra.mxu0 0.0
        %796 = vmatprep.subr.mxu0 0.0
        %797 = vmatpush1.xpose.msra.mxu0 0.0
        %798 = vmatprep.subr.mxu0 0.0
        %799 = vmatpush1.xpose.msra.mxu0 0.0
        %800 = vmatprep.subr.mxu0 0.0
        %801 = vmatpush1.xpose.msra.mxu0 0.0
        %802 = vmatprep.subr.mxu0 0.0
        %803 = vmatpush1.xpose.msra.mxu0 0.0
        %804 = vmatprep.subr.mxu0 0.0
        %805 = vmatpush1.xpose.msra.mxu0 0.0
        %806 = vmatprep.subr.mxu0 0.0
        %807 = vmatpush1.xpose.msra.mxu0 0.0
        %808 = vmatprep.subr.mxu0 0.0
        %809 = vmatpush1.xpose.msra.mxu0 0.0
        %810 = vmatprep.subr.mxu0 0.0
        %811 = vmatpush1.xpose.msra.mxu0 0.0
        %812 = vmatprep.subr.mxu0 0.0
        %813 = vmatpush1.xpose.msra.mxu0 0.0
        %814 = vmatprep.subr.mxu0 0.0
        %815 = vmatpush1.xpose.msra.mxu0 0.0
        %816 = vmatprep.subr.mxu0 0.0
        %817 = vmatpush1.xpose.msra.mxu0 0.0
        %818 = vmatprep.subr.mxu0 0.0
        %819 = vmatpush1.xpose.msra.mxu0 0.0
        %820 = vmatprep.subr.mxu0 0.0
        %821 = vmatpush1.xpose.msra.mxu0 0.0
        %822 = vmatprep.subr.mxu0 0.0
        %823 = vmatpush1.xpose.msra.mxu0 0.0
        %824 = vmatprep.subr.mxu0 0.0
        %825 = vmatpush1.xpose.msra.mxu0 0.0
        %826 = vmatprep.subr.mxu0 0.0
        %827 = vmatpush1.xpose.msra.mxu0 0.0
        %828 = vmatprep.subr.mxu0 0.0
        %829 = vmatpush1.xpose.msra.mxu0 0.0
        %830 = vmatprep.subr.mxu0 0.0
        %831 = vmatpush1.xpose.msra.mxu0 0.0
        %832 = vmatprep.subr.mxu0 0.0
        %833 = vmatpush1.xpose.msra.mxu0 0.0
        %834 = vmatprep.subr.mxu0 0.0
        %835 = vmatpush1.xpose.msra.mxu0 0.0
        %836 = vmatprep.subr.mxu0 0.0
        %837 = vmatpush1.xpose.msra.mxu0 0.0
        %838 = vmatprep.subr.mxu0 0.0
        %839 = vmatpush1.xpose.msra.mxu0 0.0
        %840 = vmatprep.subr.mxu0 0.0
        %841 = vmatpush1.xpose.msra.mxu0 0.0
        %842 = vmatprep.subr.mxu0 0.0
        %843 = vmatpush1.xpose.msra.mxu0 0.0
        %844 = vmatprep.subr.mxu0 0.0
        %845 = vmatpush1.xpose.msra.mxu0 0.0
        %846 = vmatprep.subr.mxu0 0.0
        %847 = vmatpush1.xpose.msra.mxu0 0.0
        %848 = vmatprep.subr.mxu0 0.0
        %849 = vmatpush1.xpose.msra.mxu0 0.0
        %850 = vmatprep.subr.mxu0 0.0
        %851 = vmatpush1.xpose.msra.mxu0 0.0
        %852 = vmatprep.mubr.f32.mxu0 0.0
        %v853 = vand.u32 %v408, 4294901760
        %854 = vmatmul.mubr.f32.gmra.mrb[0].mxu0 %v853
        %v855 = vpop.f32.mrb[0].mxu0
        %v856 = vadd.f32 %v784, %v855
        %v857 = vpop.f32.mrb[0].mxu0
        %858 = vdwg.mxu0
        %vm859 = vcmask 64512
        %v860 = vsel %vm859, %v856, -inf
        %861 = vmax.xlane.f32.xlu0 %v860
        %v862 = vpop.xlane.xlu0 %861
        %v863 = vsub.f32 %v856, %v862
        %v864 = vmul.f32 %v863, 1.442695
        %v865 = vpow.pop %v864
        %v866 = vsel %vm859, %v865, 0.0
        %867 = vadd.xlane.f32.xlu0 %v866
        %v868 = vpop.xlane.xlu0 %867
        %v870 = vsel %vm859, %v865, 0
        %872 = vmatprep.subr.mxu0 0.0
        %v873 = vand.u32 %v404, 4294901760
        %874 = vmatpush1.msra.mxu0 %v873
        %875 = vmatprep.subr.mxu0 0.0
        %876 = vmatpush1.msra.mxu0 0.0
        %877 = vmatprep.subr.mxu0 0.0
        %878 = vmatpush1.msra.mxu0 0.0
        %879 = vmatprep.subr.mxu0 0.0
        %880 = vmatpush1.msra.mxu0 0.0
        %881 = vmatprep.subr.mxu0 0.0
        %882 = vmatpush1.msra.mxu0 0.0
        %883 = vmatprep.subr.mxu0 0.0
        %884 = vmatpush1.msra.mxu0 0.0
        %885 = vmatprep.subr.mxu0 0.0
        %886 = vmatpush1.msra.mxu0 0.0
        %887 = vmatprep.subr.mxu0 0.0
        %888 = vmatpush1.msra.mxu0 0.0
        %889 = vmatprep.subr.mxu0 0.0
        %890 = vmatpush1.msra.mxu0 0.0
        %891 = vmatprep.subr.mxu0 0.0
        %892 = vmatpush1.msra.mxu0 0.0
        %893 = vmatprep.subr.mxu0 0.0
        %894 = vmatpush1.msra.mxu0 0.0
        %895 = vmatprep.subr.mxu0 0.0
        %896 = vmatpush1.msra.mxu0 0.0
        %897 = vmatprep.subr.mxu0 0.0
        %898 = vmatpush1.msra.mxu0 0.0
        %899 = vmatprep.subr.mxu0 0.0
        %900 = vmatpush1.msra.mxu0 0.0
        %901 = vmatprep.subr.mxu0 0.0
        %902 = vmatpush1.msra.mxu0 0.0
        %903 = vmatprep.subr.mxu0 0.0
        %904 = vmatpush1.msra.mxu0 0.0
        %905 = vmatprep.subr.mxu0 0.0
        %906 = vmatpush1.msra.mxu0 0.0
        %907 = vmatprep.subr.mxu0 0.0
        %908 = vmatpush1.msra.mxu0 0.0
        %909 = vmatprep.subr.mxu0 0.0
        %910 = vmatpush1.msra.mxu0 0.0
        %911 = vmatprep.subr.mxu0 0.0
        %912 = vmatpush1.msra.mxu0 0.0
        %913 = vmatprep.subr.mxu0 0.0
        %914 = vmatpush1.msra.mxu0 0.0
        %915 = vmatprep.subr.mxu0 0.0
        %916 = vmatpush1.msra.mxu0 0.0
        %917 = vmatprep.subr.mxu0 0.0
        %918 = vmatpush1.msra.mxu0 0.0
        %919 = vmatprep.subr.mxu0 0.0
        %920 = vmatpush1.msra.mxu0 0.0
        %921 = vmatprep.subr.mxu0 0.0
        %922 = vmatpush1.msra.mxu0 0.0
        %923 = vmatprep.subr.mxu0 0.0
        %924 = vmatpush1.msra.mxu0 0.0
        %925 = vmatprep.subr.mxu0 0.0
        %926 = vmatpush1.msra.mxu0 0.0
        %927 = vmatprep.subr.mxu0 0.0
        %928 = vmatpush1.msra.mxu0 0.0
        %929 = vmatprep.subr.mxu0 0.0
        %930 = vmatpush1.msra.mxu0 0.0
        %931 = vmatprep.subr.mxu0 0.0
        %932 = vmatpush1.msra.mxu0 0.0
        %933 = vmatprep.subr.mxu0 0.0
        %934 = vmatpush1.msra.mxu0 0.0
        %935 = vmatprep.subr.mxu0 0.0
        %936 = vmatpush1.msra.mxu0 0.0
        %937 = vmatprep.mubr.f32.mxu0 0.0
        %v938 = vand.u32 %v870, 4294901760
        %v939 = vsub.f32 %v870, %v938
        %v940 = vand.u32 %v939, 4294901760
        %v941 = vsub.f32 %v939, %v940
        %v942 = vand.u32 %v941, 4294901760
        %943 = vmatmul.mubr.f32.gmra.mrb[0].mxu0 %v942
        %v944 = vpop.f32.mrb[0].mxu0
        %v945 = vadd.f32 0.0, %v944
        %v946 = vpop.f32.mrb[0].mxu0
        %947 = vdwg.mxu0
        %948 = vmatprep.subr.mxu0 0.0
        %v949 = vand.u32 %v404, 4294901760
        %v950 = vsub.f32 %v404, %v949
        %v951 = vand.u32 %v950, 4294901760
        %v952 = vsub.f32 %v950, %v951
        %v953 = vand.u32 %v952, 4294901760
        %954 = vmatpush1.msra.mxu0 %v953
        %955 = vmatprep.subr.mxu0 0.0
        %956 = vmatpush1.msra.mxu0 0.0
        %957 = vmatprep.subr.mxu0 0.0
        %958 = vmatpush1.msra.mxu0 0.0
        %959 = vmatprep.subr.mxu0 0.0
        %960 = vmatpush1.msra.mxu0 0.0
        %961 = vmatprep.subr.mxu0 0.0
        %962 = vmatpush1.msra.mxu0 0.0
        %963 = vmatprep.subr.mxu0 0.0
        %964 = vmatpush1.msra.mxu0 0.0
        %965 = vmatprep.subr.mxu0 0.0
        %966 = vmatpush1.msra.mxu0 0.0
        %967 = vmatprep.subr.mxu0 0.0
        %968 = vmatpush1.msra.mxu0 0.0
        %969 = vmatprep.subr.mxu0 0.0
        %970 = vmatpush1.msra.mxu0 0.0
        %971 = vmatprep.subr.mxu0 0.0
        %972 = vmatpush1.msra.mxu0 0.0
        %973 = vmatprep.subr.mxu0 0.0
        %974 = vmatpush1.msra.mxu0 0.0
        %975 = vmatprep.subr.mxu0 0.0
        %976 = vmatpush1.msra.mxu0 0.0
        %977 = vmatprep.subr.mxu0 0.0
        %978 = vmatpush1.msra.mxu0 0.0
        %979 = vmatprep.subr.mxu0 0.0
        %980 = vmatpush1.msra.mxu0 0.0
        %981 = vmatprep.subr.mxu0 0.0
        %982 = vmatpush1.msra.mxu0 0.0
        %983 = vmatprep.subr.mxu0 0.0
        %984 = vmatpush1.msra.mxu0 0.0
        %985 = vmatprep.subr.mxu0 0.0
        %986 = vmatpush1.msra.mxu0 0.0
        %987 = vmatprep.subr.mxu0 0.0
        %988 = vmatpush1.msra.mxu0 0.0
        %989 = vmatprep.subr.mxu0 0.0
        %990 = vmatpush1.msra.mxu0 0.0
        %991 = vmatprep.subr.mxu0 0.0
        %992 = vmatpush1.msra.mxu0 0.0
        %993 = vmatprep.subr.mxu0 0.0
        %994 = vmatpush1.msra.mxu0 0.0
        %995 = vmatprep.subr.mxu0 0.0
        %996 = vmatpush1.msra.mxu0 0.0
        %997 = vmatprep.subr.mxu0 0.0
        %998 = vmatpush1.msra.mxu0 0.0
        %999 = vmatprep.subr.mxu0 0.0
        %1000 = vmatpush1.msra.mxu0 0.0
        %1001 = vmatprep.subr.mxu0 0.0
        %1002 = vmatpush1.msra.mxu0 0.0
        %1003 = vmatprep.subr.mxu0 0.0
        %1004 = vmatpush1.msra.mxu0 0.0
        %1005 = vmatprep.subr.mxu0 0.0
        %1006 = vmatpush1.msra.mxu0 0.0
        %1007 = vmatprep.subr.mxu0 0.0
        %1008 = vmatpush1.msra.mxu0 0.0
        %1009 = vmatprep.subr.mxu0 0.0
        %1010 = vmatpush1.msra.mxu0 0.0
        %1011 = vmatprep.subr.mxu0 0.0
        %1012 = vmatpush1.msra.mxu0 0.0
        %1013 = vmatprep.subr.mxu0 0.0
        %1014 = vmatpush1.msra.mxu0 0.0
        %1015 = vmatprep.subr.mxu0 0.0
        %1016 = vmatpush1.msra.mxu0 0.0
        %1017 = vmatprep.mubr.f32.mxu0 0.0
        %v1018 = vand.u32 %v870, 4294901760
        %1019 = vmatmul.mubr.f32.gmra.mrb[0].mxu0 %v1018
        %v1020 = vpop.f32.mrb[0].mxu0
        %v1021 = vadd.f32 %v945, %v1020
        %v1022 = vpop.f32.mrb[0].mxu0
        %1023 = vdwg.mxu0
        %1024 = vmatprep.subr.mxu0 0.0
        %v1025 = vand.u32 %v404, 4294901760
        %v1026 = vsub.f32 %v404, %v1025
        %1027 = vmatpush1.msra.mxu0 %v1026
        %1028 = vmatprep.subr.mxu0 0.0
        %1029 = vmatpush1.msra.mxu0 0.0
        %1030 = vmatprep.subr.mxu0 0.0
        %1031 = vmatpush1.msra.mxu0 0.0
        %1032 = vmatprep.subr.mxu0 0.0
        %1033 = vmatpush1.msra.mxu0 0.0
        %1034 = vmatprep.subr.mxu0 0.0
        %1035 = vmatpush1.msra.mxu0 0.0
        %1036 = vmatprep.subr.mxu0 0.0
        %1037 = vmatpush1.msra.mxu0 0.0
        %1038 = vmatprep.subr.mxu0 0.0
        %1039 = vmatpush1.msra.mxu0 0.0
        %1040 = vmatprep.subr.mxu0 0.0
        %1041 = vmatpush1.msra.mxu0 0.0
        %1042 = vmatprep.subr.mxu0 0.0
        %1043 = vmatpush1.msra.mxu0 0.0
        %1044 = vmatprep.subr.mxu0 0.0
        %1045 = vmatpush1.msra.mxu0 0.0
        %1046 = vmatprep.subr.mxu0 0.0
        %1047 = vmatpush1.msra.mxu0 0.0
        %1048 = vmatprep.subr.mxu0 0.0
        %1049 = vmatpush1.msra.mxu0 0.0
        %1050 = vmatprep.subr.mxu0 0.0
        %1051 = vmatpush1.msra.mxu0 0.0
        %1052 = vmatprep.subr.mxu0 0.0
        %1053 = vmatpush1.msra.mxu0 0.0
        %1054 = vmatprep.subr.mxu0 0.0
        %1055 = vmatpush1.msra.mxu0 0.0
        %1056 = vmatprep.subr.mxu0 0.0
        %1057 = vmatpush1.msra.mxu0 0.0
        %1058 = vmatprep.subr.mxu0 0.0
        %1059 = vmatpush1.msra.mxu0 0.0
        %1060 = vmatprep.subr.mxu0 0.0
        %1061 = vmatpush1.msra.mxu0 0.0
        %1062 = vmatprep.subr.mxu0 0.0
        %1063 = vmatpush1.msra.mxu0 0.0
        %1064 = vmatprep.subr.mxu0 0.0
        %1065 = vmatpush1.msra.mxu0 0.0
        %1066 = vmatprep.subr.mxu0 0.0
        %1067 = vmatpush1.msra.mxu0 0.0
        %1068 = vmatprep.subr.mxu0 0.0
        %1069 = vmatpush1.msra.mxu0 0.0
        %1070 = vmatprep.subr.mxu0 0.0
        %1071 = vmatpush1.msra.mxu0 0.0
        %1072 = vmatprep.subr.mxu0 0.0
        %1073 = vmatpush1.msra.mxu0 0.0
        %1074 = vmatprep.subr.mxu0 0.0
        %1075 = vmatpush1.msra.mxu0 0.0
        %1076 = vmatprep.subr.mxu0 0.0
        %1077 = vmatpush1.msra.mxu0 0.0
        %1078 = vmatprep.subr.mxu0 0.0
        %1079 = vmatpush1.msra.mxu0 0.0
        %1080 = vmatprep.subr.mxu0 0.0
        %1081 = vmatpush1.msra.mxu0 0.0
        %1082 = vmatprep.subr.mxu0 0.0
        %1083 = vmatpush1.msra.mxu0 0.0
        %1084 = vmatprep.subr.mxu0 0.0
        %1085 = vmatpush1.msra.mxu0 0.0
        %1086 = vmatprep.subr.mxu0 0.0
        %1087 = vmatpush1.msra.mxu0 0.0
        %1088 = vmatprep.subr.mxu0 0.0
        %1089 = vmatpush1.msra.mxu0 0.0
        %1090 = vmatprep.mubr.f32.mxu0 0.0
        %v1091 = vand.u32 %v870, 4294901760
        %v1092 = vsub.f32 %v870, %v1091
        %1093 = vmatmul.mubr.f32.gmra.mrb[0].mxu0 %v1092
        %v1094 = vpop.f32.mrb[0].mxu0
        %v1095 = vadd.f32 %v1021, %v1094
        %v1096 = vpop.f32.mrb[0].mxu0
        %1097 = vdwg.mxu0
        %1098 = vmatprep.subr.mxu0 0.0
        %v1099 = vand.u32 %v404, 4294901760
        %1100 = vmatpush1.msra.mxu0 %v1099
        %1101 = vmatprep.subr.mxu0 0.0
        %1102 = vmatpush1.msra.mxu0 0.0
        %1103 = vmatprep.subr.mxu0 0.0
        %1104 = vmatpush1.msra.mxu0 0.0
        %1105 = vmatprep.subr.mxu0 0.0
        %1106 = vmatpush1.msra.mxu0 0.0
        %1107 = vmatprep.subr.mxu0 0.0
        %1108 = vmatpush1.msra.mxu0 0.0
        %1109 = vmatprep.subr.mxu0 0.0
        %1110 = vmatpush1.msra.mxu0 0.0
        %1111 = vmatprep.subr.mxu0 0.0
        %1112 = vmatpush1.msra.mxu0 0.0
        %1113 = vmatprep.subr.mxu0 0.0
        %1114 = vmatpush1.msra.mxu0 0.0
        %1115 = vmatprep.subr.mxu0 0.0
        %1116 = vmatpush1.msra.mxu0 0.0
        %1117 = vmatprep.subr.mxu0 0.0
        %1118 = vmatpush1.msra.mxu0 0.0
        %1119 = vmatprep.subr.mxu0 0.0
        %1120 = vmatpush1.msra.mxu0 0.0
        %1121 = vmatprep.subr.mxu0 0.0
        %1122 = vmatpush1.msra.mxu0 0.0
        %1123 = vmatprep.subr.mxu0 0.0
        %1124 = vmatpush1.msra.mxu0 0.0
        %1125 = vmatprep.subr.mxu0 0.0
        %1126 = vmatpush1.msra.mxu0 0.0
        %1127 = vmatprep.subr.mxu0 0.0
        %1128 = vmatpush1.msra.mxu0 0.0
        %1129 = vmatprep.subr.mxu0 0.0
        %1130 = vmatpush1.msra.mxu0 0.0
        %1131 = vmatprep.subr.mxu0 0.0
        %1132 = vmatpush1.msra.mxu0 0.0
        %1133 = vmatprep.subr.mxu0 0.0
        %1134 = vmatpush1.msra.mxu0 0.0
        %1135 = vmatprep.subr.mxu0 0.0
        %1136 = vmatpush1.msra.mxu0 0.0
        %1137 = vmatprep.subr.mxu0 0.0
        %1138 = vmatpush1.msra.mxu0 0.0
        %1139 = vmatprep.subr.mxu0 0.0
        %1140 = vmatpush1.msra.mxu0 0.0
        %1141 = vmatprep.subr.mxu0 0.0
        %1142 = vmatpush1.msra.mxu0 0.0
        %1143 = vmatprep.subr.mxu0 0.0
        %1144 = vmatpush1.msra.mxu0 0.0
        %1145 = vmatprep.subr.mxu0 0.0
        %1146 = vmatpush1.msra.mxu0 0.0
        %1147 = vmatprep.subr.mxu0 0.0
        %1148 = vmatpush1.msra.mxu0 0.0
        %1149 = vmatprep.subr.mxu0 0.0
        %1150 = vmatpush1.msra.mxu0 0.0
        %1151 = vmatprep.subr.mxu0 0.0
        %1152 = vmatpush1.msra.mxu0 0.0
        %1153 = vmatprep.subr.mxu0 0.0
        %1154 = vmatpush1.msra.mxu0 0.0
        %1155 = vmatprep.subr.mxu0 0.0
        %1156 = vmatpush1.msra.mxu0 0.0
        %1157 = vmatprep.subr.mxu0 0.0
        %1158 = vmatpush1.msra.mxu0 0.0
        %1159 = vmatprep.subr.mxu0 0.0
        %1160 = vmatpush1.msra.mxu0 0.0
        %1161 = vmatprep.subr.mxu0 0.0
        %1162 = vmatpush1.msra.mxu0 0.0
        %1163 = vmatprep.mubr.f32.mxu0 0.0
        %v1164 = vand.u32 %v870, 4294901760
        %v1165 = vsub.f32 %v870, %v1164
        %v1166 = vand.u32 %v1165, 4294901760
        %1167 = vmatmul.mubr.f32.gmra.mrb[0].mxu0 %v1166
        %v1168 = vpop.f32.mrb[0].mxu0
        %v1169 = vadd.f32 %v1095, %v1168
        %v1170 = vpop.f32.mrb[0].mxu0
        %1171 = vdwg.mxu0
        %1172 = vmatprep.subr.mxu0 0.0
        %v1173 = vand.u32 %v404, 4294901760
        %v1174 = vsub.f32 %v404, %v1173
        %v1175 = vand.u32 %v1174, 4294901760
        %1176 = vmatpush1.msra.mxu0 %v1175
        %1177 = vmatprep.subr.mxu0 0.0
        %1178 = vmatpush1.msra.mxu0 0.0
        %1179 = vmatprep.subr.mxu0 0.0
        %1180 = vmatpush1.msra.mxu0 0.0
        %1181 = vmatprep.subr.mxu0 0.0
        %1182 = vmatpush1.msra.mxu0 0.0
        %1183 = vmatprep.subr.mxu0 0.0
        %1184 = vmatpush1.msra.mxu0 0.0
        %1185 = vmatprep.subr.mxu0 0.0
        %1186 = vmatpush1.msra.mxu0 0.0
        %1187 = vmatprep.subr.mxu0 0.0
        %1188 = vmatpush1.msra.mxu0 0.0
        %1189 = vmatprep.subr.mxu0 0.0
        %1190 = vmatpush1.msra.mxu0 0.0
        %1191 = vmatprep.subr.mxu0 0.0
        %1192 = vmatpush1.msra.mxu0 0.0
        %1193 = vmatprep.subr.mxu0 0.0
        %1194 = vmatpush1.msra.mxu0 0.0
        %1195 = vmatprep.subr.mxu0 0.0
        %1196 = vmatpush1.msra.mxu0 0.0
        %1197 = vmatprep.subr.mxu0 0.0
        %1198 = vmatpush1.msra.mxu0 0.0
        %1199 = vmatprep.subr.mxu0 0.0
        %1200 = vmatpush1.msra.mxu0 0.0
        %1201 = vmatprep.subr.mxu0 0.0
        %1202 = vmatpush1.msra.mxu0 0.0
        %1203 = vmatprep.subr.mxu0 0.0
        %1204 = vmatpush1.msra.mxu0 0.0
        %1205 = vmatprep.subr.mxu0 0.0
        %1206 = vmatpush1.msra.mxu0 0.0
        %1207 = vmatprep.subr.mxu0 0.0
        %1208 = vmatpush1.msra.mxu0 0.0
        %1209 = vmatprep.subr.mxu0 0.0
        %1210 = vmatpush1.msra.mxu0 0.0
        %1211 = vmatprep.subr.mxu0 0.0
        %1212 = vmatpush1.msra.mxu0 0.0
        %1213 = vmatprep.subr.mxu0 0.0
        %1214 = vmatpush1.msra.mxu0 0.0
        %1215 = vmatprep.subr.mxu0 0.0
        %1216 = vmatpush1.msra.mxu0 0.0
        %1217 = vmatprep.subr.mxu0 0.0
        %1218 = vmatpush1.msra.mxu0 0.0
        %1219 = vmatprep.subr.mxu0 0.0
        %1220 = vmatpush1.msra.mxu0 0.0
        %1221 = vmatprep.subr.mxu0 0.0
        %1222 = vmatpush1.msra.mxu0 0.0
        %1223 = vmatprep.subr.mxu0 0.0
        %1224 = vmatpush1.msra.mxu0 0.0
        %1225 = vmatprep.subr.mxu0 0.0
        %1226 = vmatpush1.msra.mxu0 0.0
        %1227 = vmatprep.subr.mxu0 0.0
        %1228 = vmatpush1.msra.mxu0 0.0
        %1229 = vmatprep.subr.mxu0 0.0
        %1230 = vmatpush1.msra.mxu0 0.0
        %1231 = vmatprep.subr.mxu0 0.0
        %1232 = vmatpush1.msra.mxu0 0.0
        %1233 = vmatprep.subr.mxu0 0.0
        %1234 = vmatpush1.msra.mxu0 0.0
        %1235 = vmatprep.subr.mxu0 0.0
        %1236 = vmatpush1.msra.mxu0 0.0
        %1237 = vmatprep.subr.mxu0 0.0
        %1238 = vmatpush1.msra.mxu0 0.0
        %1239 = vmatprep.mubr.f32.mxu0 0.0
        %v1240 = vand.u32 %v870, 4294901760
        %1241 = vmatmul.mubr.f32.gmra.mrb[0].mxu0 %v1240
        %v1242 = vpop.f32.mrb[0].mxu0
        %v1243 = vadd.f32 %v1169, %v1242
        %v1244 = vpop.f32.mrb[0].mxu0
        %1245 = vdwg.mxu0
        %1246 = vmatprep.subr.mxu0 0.0
        %v1247 = vand.u32 %v404, 4294901760
        %1248 = vmatpush1.msra.mxu0 %v1247
        %1249 = vmatprep.subr.mxu0 0.0
        %1250 = vmatpush1.msra.mxu0 0.0
        %1251 = vmatprep.subr.mxu0 0.0
        %1252 = vmatpush1.msra.mxu0 0.0
        %1253 = vmatprep.subr.mxu0 0.0
        %1254 = vmatpush1.msra.mxu0 0.0
        %1255 = vmatprep.subr.mxu0 0.0
        %1256 = vmatpush1.msra.mxu0 0.0
        %1257 = vmatprep.subr.mxu0 0.0
        %1258 = vmatpush1.msra.mxu0 0.0
        %1259 = vmatprep.subr.mxu0 0.0
        %1260 = vmatpush1.msra.mxu0 0.0
        %1261 = vmatprep.subr.mxu0 0.0
        %1262 = vmatpush1.msra.mxu0 0.0
        %1263 = vmatprep.subr.mxu0 0.0
        %1264 = vmatpush1.msra.mxu0 0.0
        %1265 = vmatprep.subr.mxu0 0.0
        %1266 = vmatpush1.msra.mxu0 0.0
        %1267 = vmatprep.subr.mxu0 0.0
        %1268 = vmatpush1.msra.mxu0 0.0
        %1269 = vmatprep.subr.mxu0 0.0
        %1270 = vmatpush1.msra.mxu0 0.0
        %1271 = vmatprep.subr.mxu0 0.0
        %1272 = vmatpush1.msra.mxu0 0.0
        %1273 = vmatprep.subr.mxu0 0.0
        %1274 = vmatpush1.msra.mxu0 0.0
        %1275 = vmatprep.subr.mxu0 0.0
        %1276 = vmatpush1.msra.mxu0 0.0
        %1277 = vmatprep.subr.mxu0 0.0
        %1278 = vmatpush1.msra.mxu0 0.0
        %1279 = vmatprep.subr.mxu0 0.0
        %1280 = vmatpush1.msra.mxu0 0.0
        %1281 = vmatprep.subr.mxu0 0.0
        %1282 = vmatpush1.msra.mxu0 0.0
        %1283 = vmatprep.subr.mxu0 0.0
        %1284 = vmatpush1.msra.mxu0 0.0
        %1285 = vmatprep.subr.mxu0 0.0
        %1286 = vmatpush1.msra.mxu0 0.0
        %1287 = vmatprep.subr.mxu0 0.0
        %1288 = vmatpush1.msra.mxu0 0.0
        %1289 = vmatprep.subr.mxu0 0.0
        %1290 = vmatpush1.msra.mxu0 0.0
        %1291 = vmatprep.subr.mxu0 0.0
        %1292 = vmatpush1.msra.mxu0 0.0
        %1293 = vmatprep.subr.mxu0 0.0
        %1294 = vmatpush1.msra.mxu0 0.0
        %1295 = vmatprep.subr.mxu0 0.0
        %1296 = vmatpush1.msra.mxu0 0.0
        %1297 = vmatprep.subr.mxu0 0.0
        %1298 = vmatpush1.msra.mxu0 0.0
        %1299 = vmatprep.subr.mxu0 0.0
        %1300 = vmatpush1.msra.mxu0 0.0
        %1301 = vmatprep.subr.mxu0 0.0
        %1302 = vmatpush1.msra.mxu0 0.0
        %1303 = vmatprep.subr.mxu0 0.0
        %1304 = vmatpush1.msra.mxu0 0.0
        %1305 = vmatprep.subr.mxu0 0.0
        %1306 = vmatpush1.msra.mxu0 0.0
        %1307 = vmatprep.subr.mxu0 0.0
        %1308 = vmatpush1.msra.mxu0 0.0
        %1309 = vmatprep.subr.mxu0 0.0
        %1310 = vmatpush1.msra.mxu0 0.0
        %1311 = vmatprep.mubr.f32.mxu0 0.0
        %v1312 = vand.u32 %v870, 4294901760
        %1313 = vmatmul.mubr.f32.gmra.mrb[0].mxu0 %v1312
        %v1314 = vpop.f32.mrb[0].mxu0
        %v1315 = vadd.f32 %v1243, %v1314
        %v1316 = vpop.f32.mrb[0].mxu0
        %1317 = vdwg.mxu0
        %v1318 = vrcp.pop %v868
        %v1319 = vmul.f32 %v1315, %v1318
        %v1320 = vadd.f32 %v1319, %v400
        %v1321 = vsel %vm406, %v1320, 0.0
        %1322 = vadd.xlane.f32.xlu0 %v1321
        %v1323 = vpop.xlane.xlu0 %1322
        %v1324 = vrcp.pop 32.0
        %v1325 = vmul.f32 %v1323, %v1324
        %v1326 = vsub.f32 %v1320, %v1325
        %v1327 = vmul.f32 %v1326, %v1326
        %v1328 = vsel %vm406, %v1327, 0.0
        %1329 = vadd.xlane.f32.xlu0 %v1328
        %v1330 = vpop.xlane.xlu0 %1329
        %v1331 = vmul.f32 %v1330, %v1324
        %v1332 = vadd.f32 %v1331, 1e-05
        %v1333 = vrsqrt.pop %v1332
        %v1334 = vmul.f32 %v1326, %v1333
        %v1335 = vld [vmem:[#allocation10] sm:$0x1]
        %v1337 = vlaneseq
        %v1338 = vshrl.u32 %v1337, 7
        %v1339 = vsub.s32 0, %v1338
        %v1340 = vrot.slane %v1335, %v1339
        %v1342 = vmul.f32 %v1334, %v1340
        %v1343 = vld [vmem:[#allocation11] sm:$0x1]
        %v1345 = vlaneseq
        %v1346 = vshrl.u32 %v1345, 7
        %v1347 = vsub.s32 0, %v1346
        %v1348 = vrot.slane %v1343, %v1347
        %v1350 = vadd.f32 %v1342, %v1348
        %1351 = vst.msk [vmem:[%s399] sm:$0xff] %vm406, %v1350
        %s1352 = sand.u32 %s184, 1
        %s1353 = scalar_lea.sflag [#allocation4], %s1352
        %s1354 = sand.u32 %s184, 1
        %s1355 = smul.addr %s1354, 8
        %s1356 = scalar_lea.vmem [#allocation13], %s1355
        // Predicated region
        $region69: #{tpu_custom_call.1} parent=43 // pred_check
          %p1357 = pneg %p194
        $region70: #{tpu_custom_call.1} parent=43 // pred_check_branch
          %1359 = sbr.rel (%p1357) target = $region72
        $region71: #{tpu_custom_call.1} parent=43 // pred_region
          %s1361 = ssub.s32 128, 128
          %1362 = vsyncadd %s1353, %s1361
          %s1363 = smul.addr %s30, 128
          %s1364 = scalar_lea.hbm %s6, %s1363
          %s1366 = sshll.u32 %s1356, 4
          %s1367 = int_to_ptr.vmem [resolvable:$true] %s1366
          %1369 = dma.vmem_to_hbm [thread:$0]  %s1367, 128, %s1364, %s1353
        $region72: #{tpu_custom_call.1} parent=43 // pred_fallthru
          _
      $region44: #{tpu_custom_call.1} parent=5 // pred_fallthru
        _
      %p1370 = scmp.le.s32.totalorder 2, %s25
      // Predicated region
      $region73: #{tpu_custom_call.1} parent=5 // pred_check
        %p1371 = pneg %p1370
      $region74: #{tpu_custom_call.1} parent=5 // pred_check_branch
        %1373 = sbr.rel (%p1371) target = $region76
      $region75: #{tpu_custom_call.1} parent=5 // pred_region
        %s1374 = ssub.s32 %s25, 2
        // Predicated region
        $region77: #{tpu_custom_call.1} parent=75 // pred_check
          %p1375 = pneg %p200
        $region78: #{tpu_custom_call.1} parent=75 // pred_check_branch
          %1377 = sbr.rel (%p1375) target = $region80
        $region79: #{tpu_custom_call.1} parent=75 // pred_region
          %s1378 = sand.u32 %s185, 1
          %s1379 = scalar_lea.sflag [#allocation4], %s1378
          %s1380 = sand.u32 %s185, 1
          %s1381 = smul.addr %s1380, 8
          %s1382 = scalar_lea.vmem [#allocation13], %s1381
          %1383 = dma.done %s1379, 128
        $region80: #{tpu_custom_call.1} parent=75 // pred_fallthru
          _
      $region76: #{tpu_custom_call.1} parent=5 // pred_fallthru
        _
    $region6: #{tpu_custom_call.1} parent=1 // loop_footer
      %s29 = sadd.s32 1, %s25
    $region7: #{tpu_custom_call.1} parent=1 // loop_footer_branch
      %24 = sbr.rel target = $region3
    $region8: #{tpu_custom_call.1} parent=1 // loop_exit
      _
    %1384 = vsyncpa [#allocation3], 1
    %s1385 = scalar_lea.sflag [#allocation3], 1
    %1386 = vsyncpa %s1385, 1
    %1387 = vsyncpa [#allocation6], 1
    %s1388 = scalar_lea.sflag [#allocation6], 1
    %1389 = vsyncpa %s1388, 1
    %1390 = vsyncpa [#allocation9], 1
    %s1391 = scalar_lea.sflag [#allocation9], 1
    %1392 = vsyncpa %s1391, 1
    %1393 = vsyncpa [#allocation12], 1
    %1394 = vsyncpa [#allocation4], 1
    %s1395 = scalar_lea.sflag [#allocation4], 1
    %1396 = vsyncpa %s1395, 1

</llo_original>
